<compile_context>
chip_gen: v7x
topology: tpu7x:2x2x1
jax: 0.10.0
libtpu: 0.0.40
codegen_flags: <defaults>
</compile_context>

<pallas_src>
import functools
import math

import jax
import jax.numpy as jnp
from jax.experimental import pallas as pl
from jax.experimental.pallas import tpu as pltpu


def _self_attention_kernel(x_ref, pmat_ref, wqkv_ref, bqkv_ref,
                           woutT_ref, bout_ref, o_ref,
                           *, n_head, scale, eps):
    """Fused GroupNorm -> QKV proj -> attention -> out proj -> residual.

    Operates on one batch element in channel-major layout (C, S), where
    S = D*H*W sits on the lane (last) dimension.
    """
    x = x_ref[...].astype(jnp.float32)                 # (C, S)
    C, S = x.shape
    hd = C // n_head

    # ---- GroupNorm (affine already folded into the QKV weights) ------------
    # Per-channel sums over spatial, then group-average via the (C, C)
    # group-averaging matrix P (P[c, c'] = 1/(cg*S) if same group else 0).
    P = pmat_ref[...]
    s1 = jnp.sum(x, axis=1, keepdims=True)             # (C, 1)
    s2 = jnp.sum(x * x, axis=1, keepdims=True)         # (C, 1)
    mean_c = jnp.dot(P, s1, preferred_element_type=jnp.float32)   # (C, 1)
    msq_c = jnp.dot(P, s2, preferred_element_type=jnp.float32)    # (C, 1)
    var_c = msq_c - mean_c * mean_c
    xn = (x - mean_c) * jax.lax.rsqrt(var_c + eps)     # (C, S)

    # ---- QKV projection (1x1x1 conv == matmul over channels) ---------------
    qkv = (jnp.dot(wqkv_ref[...], xn, preferred_element_type=jnp.float32)
           + bqkv_ref[...])                            # (3*C, S)

    # ---- Per-head attention + fused per-head output projection -------------
    # Channel order matches PyTorch's view(batch, n_head, 3*hd, ...).chunk(3).
    woutT = woutT_ref[...]                             # (C_in, C_out)
    acc = None
    for hh in range(n_head):
        base = hh * 3 * hd
        q = qkv[base: base + hd, :] * scale            # (hd, S); scale folded here
        k = qkv[base + hd: base + 2 * hd, :]           # (hd, S)
        v = qkv[base + 2 * hd: base + 3 * hd, :]       # (hd, S)
        # logits[sq, sk] = sum_c q[c, sq] * k[c, sk]
        logits = jax.lax.dot_general(
            q, k, dimension_numbers=(((0,), (0,)), ((), ())),
            preferred_element_type=jnp.float32)        # (S, S)
        m = jnp.max(logits, axis=-1, keepdims=True)
        p = jnp.exp(logits - m)
        l = jnp.sum(p, axis=-1, keepdims=True)         # (S, 1)
        attn = p * pl.reciprocal(l, approx=True)       # EUP recip on (S,1) only
        # out_h[c, sq] = sum_sk v[c, sk] * attn[sq, sk]
        out_h = jax.lax.dot_general(
            v, attn, dimension_numbers=(((1,), (1,)), ((), ())),
            preferred_element_type=jnp.float32)        # (hd, S)
        # contrib[o, sq] = sum_c W_out[o, c_head] * out_h[c_head, sq]
        w_h = woutT[hh * hd:(hh + 1) * hd, :]          # sublane slice (hd, C)
        contrib = jax.lax.dot_general(
            w_h, out_h, dimension_numbers=(((0,), (0,)), ((), ())),
            preferred_element_type=jnp.float32)        # (C, S)
        acc = contrib if acc is None else acc + contrib

    # ---- Output bias + residual ---------------------------------------------
    o_ref[...] = (acc + bout_ref[...] + x).astype(o_ref.dtype)


def self_attention_forward(x, gamma, beta, w_qkv, b_qkv, w_out, b_out,
                           *, n_head=1, groups=32, eps=1e-5):
    """Forward pass of the PyTorch SelfAttention module. x is (B, C, D, H, W)."""
    B, C, D, H, W = x.shape
    assert C % groups == 0 and C % n_head == 0
    S = D * H * W
    cg = C // groups

    # Free reshapes only (no pad / transpose HBM round-trips of activations).
    x3 = x.reshape(B, C, S)
    gamma_f = gamma.reshape(C).astype(jnp.float32)
    beta_f = beta.reshape(C).astype(jnp.float32)
    wqkv2 = w_qkv.reshape(3 * C, C).astype(jnp.float32)
    bqkv2 = b_qkv.reshape(3 * C).astype(jnp.float32)
    wout2 = w_out.reshape(C, C).astype(jnp.float32)
    bout2 = b_out.reshape(C, 1).astype(jnp.float32)

    # Fold the GroupNorm affine into the QKV conv (exact algebra):
    #   W (xn*gamma + beta) + b == (W*gamma^T) xn + (W beta + b)
    # One-time O(C^2) host prep; removes a (C, S) multiply-add per batch.
    wqkv_eff = wqkv2 * gamma_f[None, :]
    bqkv_eff = (bqkv2 + wqkv2 @ beta_f).reshape(3 * C, 1)
    woutT = wout2.T    # (C_in, C_out): per-head slices land on the sublane axis

    # Group-averaging matrix for GroupNorm statistics.
    cid = jnp.arange(C)
    same_group = (cid[:, None] // cg) == (cid[None, :] // cg)
    pmat = same_group.astype(jnp.float32) / float(cg * S)

    kernel = functools.partial(_self_attention_kernel, n_head=n_head,
                               scale=1.0 / math.sqrt(C), eps=eps)

    # TODO(synk): for large D*H*W (S >> 1024) tile the key/value axis
    # flash-attention style instead of materializing the full (S, S) scores.
    out3 = pl.pallas_call(
        kernel,
        out_shape=jax.ShapeDtypeStruct((B, C, S), x.dtype),
        grid_spec=pltpu.PrefetchScalarGridSpec(
            num_scalar_prefetch=0,
            grid=(B,),
            in_specs=[
                pl.BlockSpec((None, C, S), lambda b: (b, 0, 0)),   # x (per batch)
                pl.BlockSpec((C, C), lambda b: (0, 0)),            # group-avg matrix
                pl.BlockSpec((3 * C, C), lambda b: (0, 0)),        # w_qkv (gamma-folded)
                pl.BlockSpec((3 * C, 1), lambda b: (0, 0)),        # b_qkv (beta-folded)
                pl.BlockSpec((C, C), lambda b: (0, 0)),            # w_out^T
                pl.BlockSpec((C, 1), lambda b: (0, 0)),            # b_out
            ],
            out_specs=pl.BlockSpec((None, C, S), lambda b: (b, 0, 0)),
        ),
        compiler_params=pltpu.CompilerParams(
            dimension_semantics=("parallel",),
        ),
    )(x3, pmat, wqkv_eff, bqkv_eff, woutT, bout2)

    return out3.reshape(B, C, D, H, W)


def _reference_forward(x, gamma, beta, w_qkv, b_qkv, w_out, b_out,
                       *, n_head, groups, eps=1e-5):
    """Pure-JAX mirror of the PyTorch module's forward (for verification)."""
    B, C, D, H, W = x.shape
    hd = C // n_head
    hp = jax.lax.Precision.HIGHEST

    xg = x.reshape(B, groups, C // groups, D, H, W)
    mean = xg.mean(axis=(2, 3, 4, 5), keepdims=True)
    var = ((xg - mean) ** 2).mean(axis=(2, 3, 4, 5), keepdims=True)
    xn = ((xg - mean) / jnp.sqrt(var + eps)).reshape(B, C, D, H, W)
    h = xn * gamma.reshape(1, C, 1, 1, 1) + beta.reshape(1, C, 1, 1, 1)

    qkv = (jnp.einsum('oc,bcdhw->bodhw', w_qkv, h, precision=hp)
           + b_qkv.reshape(1, 3 * C, 1, 1, 1))
    qkv = qkv.reshape(B, n_head, 3 * hd, D, H, W)
    q, k, v = qkv[:, :, :hd], qkv[:, :, hd:2 * hd], qkv[:, :, 2 * hd:]

    attn = jnp.einsum('bncdhw,bnczyx->bndhwzyx', q, k, precision=hp) / math.sqrt(C)
    attn = attn.reshape(B, n_head, D, H, W, -1)
    attn = jax.nn.softmax(attn, axis=-1)
    attn = attn.reshape(B, n_head, D, H, W, D, H, W)
    out = jnp.einsum('bndhwzyx,bnczyx->bncdhw', attn, v, precision=hp)
    out = out.reshape(B, C, D, H, W)
    out = (jnp.einsum('oc,bcdhw->bodhw', w_out, out, precision=hp)
           + b_out.reshape(1, C, 1, 1, 1))
    return out + x


if __name__ == "__main__":
    key = jax.random.PRNGKey(0)
    B, C, D, H, W = 2, 32, 4, 8, 8          # S = D*H*W = 256 (lane-dense)
    n_head, groups = 2, 8

    ks = jax.random.split(key, 7)
    x = jax.random.normal(ks[0], (B, C, D, H, W), jnp.float32)
    gamma = 1.0 + 0.1 * jax.random.normal(ks[1], (C,), jnp.float32)
    beta = 0.1 * jax.random.normal(ks[2], (C,), jnp.float32)
    w_qkv = jax.random.normal(ks[3], (3 * C, C), jnp.float32) / math.sqrt(C)
    b_qkv = 0.1 * jax.random.normal(ks[4], (3 * C,), jnp.float32)
    w_out = jax.random.normal(ks[5], (C, C), jnp.float32) / math.sqrt(C)
    b_out = 0.1 * jax.random.normal(ks[6], (C,), jnp.float32)

    y = self_attention_forward(x, gamma, beta, w_qkv, b_qkv, w_out, b_out,
                               n_head=n_head, groups=groups)
    y = jax.block_until_ready(y)

    y_ref = _reference_forward(x, gamma, beta, w_qkv, b_qkv, w_out, b_out,
                               n_head=n_head, groups=groups)
    assert y.shape == x.shape and y.dtype == x.dtype
    max_err = float(jnp.max(jnp.abs(y - y_ref)))
    assert jnp.allclose(y, y_ref, atol=2e-3, rtol=2e-3), f"max_err={max_err}"

    print("KERNEL_OK")
</pallas_src>

<mosaic_0001>
module attributes {stable_mosaic.version = 11 : i64} {
  func.func @_self_attention_kernel(%arg0: i32, %arg1: memref<1x32x256xf32, #tpu.memory_space<vmem>>, %arg2: memref<32x32xf32, #tpu.memory_space<vmem>>, %arg3: memref<96x32xf32, #tpu.memory_space<vmem>>, %arg4: memref<96x1xf32, #tpu.memory_space<vmem>>, %arg5: memref<32x32xf32, #tpu.memory_space<vmem>>, %arg6: memref<32x1xf32, #tpu.memory_space<vmem>>, %arg7: memref<1x32x256xf32, #tpu.memory_space<vmem>>) attributes {dimension_semantics = [#tpu.dimension_semantics<parallel>], iteration_bounds = array<i64: 2>, scalar_prefetch = 0 : i64, scratch_operands = 0 : i64, tpu.core_type = #tpu.core_type<tc>, window_params = [{transform_indices = @transform_0, window_bounds = array<i64: 1, 32, 256>}, {pipeline_mode = #tpu.pipeline_mode<synchronous>, transform_indices = @transform_1, window_bounds = array<i64: 32, 32>}, {pipeline_mode = #tpu.pipeline_mode<synchronous>, transform_indices = @transform_2, window_bounds = array<i64: 96, 32>}, {pipeline_mode = #tpu.pipeline_mode<synchronous>, transform_indices = @transform_3, window_bounds = array<i64: 96, 1>}, {pipeline_mode = #tpu.pipeline_mode<synchronous>, transform_indices = @transform_4, window_bounds = array<i64: 32, 32>}, {pipeline_mode = #tpu.pipeline_mode<synchronous>, transform_indices = @transform_5, window_bounds = array<i64: 32, 1>}, {transform_indices = @transform_6, window_bounds = array<i64: 1, 32, 256>}]} {
    %c0 = arith.constant 0 : index
    %c0_0 = arith.constant 0 : index
    %c0_1 = arith.constant 0 : index
    %0 = vector.load %arg1[%c0, %c0_0, %c0_1] : memref<1x32x256xf32, #tpu.memory_space<vmem>>, vector<1x32x256xf32>
    %1 = vector.shape_cast %0 : vector<1x32x256xf32> to vector<32x256xf32>
    %c0_2 = arith.constant 0 : index
    %c0_3 = arith.constant 0 : index
    %2 = vector.load %arg2[%c0_2, %c0_3] : memref<32x32xf32, #tpu.memory_space<vmem>>, vector<32x32xf32>
    %cst = arith.constant dense<0.000000e+00> : vector<32xf32>
    %3 = vector.multi_reduction <add>, %1, %cst [1] : vector<32x256xf32> to vector<32xf32>
    %4 = vector.shape_cast %3 : vector<32xf32> to vector<32x1xf32>
    %5 = arith.mulf %1, %1 : vector<32x256xf32>
    %cst_4 = arith.constant dense<0.000000e+00> : vector<32xf32>
    %6 = vector.multi_reduction <add>, %5, %cst_4 [1] : vector<32x256xf32> to vector<32xf32>
    %7 = vector.shape_cast %6 : vector<32xf32> to vector<32x1xf32>
    %cst_5 = arith.constant dense<0.000000e+00> : vector<32x1xf32>
    %8 = tpu.matmul %2, %4, %cst_5 {dimension_numbers = #tpu.dot_dimension_numbers<[1], [0], [0], [1], [0, 0, 1, 1], [], []>} : vector<32x32xf32>, vector<32x1xf32>, vector<32x1xf32> -> vector<32x1xf32>
    %cst_6 = arith.constant dense<0.000000e+00> : vector<32x1xf32>
    %9 = tpu.matmul %2, %7, %cst_6 {dimension_numbers = #tpu.dot_dimension_numbers<[1], [0], [0], [1], [0, 0, 1, 1], [], []>} : vector<32x32xf32>, vector<32x1xf32>, vector<32x1xf32> -> vector<32x1xf32>
    %10 = arith.mulf %8, %8 : vector<32x1xf32>
    %11 = arith.subf %9, %10 : vector<32x1xf32>
    %12 = vector.broadcast %8 : vector<32x1xf32> to vector<32x256xf32>
    %13 = arith.subf %1, %12 : vector<32x256xf32>
    %cst_7 = arith.constant 9.99999974E-6 : f32
    %14 = vector.broadcast %cst_7 : f32 to vector<32x1xf32>
    %15 = arith.addf %11, %14 : vector<32x1xf32>
    %16 = math.rsqrt %15 : vector<32x1xf32>
    %17 = vector.broadcast %16 : vector<32x1xf32> to vector<32x256xf32>
    %18 = arith.mulf %13, %17 : vector<32x256xf32>
    %c0_8 = arith.constant 0 : index
    %c0_9 = arith.constant 0 : index
    %19 = vector.load %arg3[%c0_8, %c0_9] : memref<96x32xf32, #tpu.memory_space<vmem>>, vector<96x32xf32>
    %cst_10 = arith.constant dense<0.000000e+00> : vector<96x256xf32>
    %20 = tpu.matmul %19, %18, %cst_10 {dimension_numbers = #tpu.dot_dimension_numbers<[1], [0], [0], [1], [0, 0, 1, 1], [], []>} : vector<96x32xf32>, vector<32x256xf32>, vector<96x256xf32> -> vector<96x256xf32>
    %c0_11 = arith.constant 0 : index
    %c0_12 = arith.constant 0 : index
    %21 = vector.load %arg4[%c0_11, %c0_12] : memref<96x1xf32, #tpu.memory_space<vmem>>, vector<96x1xf32>
    %22 = vector.broadcast %21 : vector<96x1xf32> to vector<96x256xf32>
    %23 = arith.addf %20, %22 : vector<96x256xf32>
    %c0_13 = arith.constant 0 : index
    %c0_14 = arith.constant 0 : index
    %24 = vector.load %arg5[%c0_13, %c0_14] : memref<32x32xf32, #tpu.memory_space<vmem>>, vector<32x32xf32>
    %25 = vector.extract_strided_slice %23 {offsets = [0, 0], sizes = [16, 256], strides = [1, 1]} : vector<96x256xf32> to vector<16x256xf32>
    %cst_15 = arith.constant 0.176776692 : f32
    %26 = vector.broadcast %cst_15 : f32 to vector<16x256xf32>
    %27 = arith.mulf %25, %26 : vector<16x256xf32>
    %28 = vector.extract_strided_slice %23 {offsets = [16, 0], sizes = [16, 256], strides = [1, 1]} : vector<96x256xf32> to vector<16x256xf32>
    %29 = vector.extract_strided_slice %23 {offsets = [32, 0], sizes = [16, 256], strides = [1, 1]} : vector<96x256xf32> to vector<16x256xf32>
    %cst_16 = arith.constant dense<0.000000e+00> : vector<256x256xf32>
    %30 = tpu.matmul %27, %28, %cst_16 {dimension_numbers = #tpu.dot_dimension_numbers<[0], [0], [1], [1], [0, 1, 1, 1], [], []>} : vector<16x256xf32>, vector<16x256xf32>, vector<256x256xf32> -> vector<256x256xf32>
    %cst_17 = arith.constant dense<0xFF800000> : vector<256xf32>
    %31 = vector.multi_reduction <maximumf>, %30, %cst_17 [1] : vector<256x256xf32> to vector<256xf32>
    %32 = vector.shape_cast %31 : vector<256xf32> to vector<256x1xf32>
    %33 = vector.broadcast %32 : vector<256x1xf32> to vector<256x256xf32>
    %34 = arith.subf %30, %33 : vector<256x256xf32>
    %35 = math.exp %34 : vector<256x256xf32>
    %cst_18 = arith.constant dense<0.000000e+00> : vector<256xf32>
    %36 = vector.multi_reduction <add>, %35, %cst_18 [1] : vector<256x256xf32> to vector<256xf32>
    %37 = vector.shape_cast %36 : vector<256xf32> to vector<256x1xf32>
    %38 = tpu.reciprocal %37 {approx = true} : vector<256x1xf32> -> vector<256x1xf32>
    %39 = vector.broadcast %38 : vector<256x1xf32> to vector<256x256xf32>
    %40 = arith.mulf %35, %39 : vector<256x256xf32>
    %cst_19 = arith.constant dense<0.000000e+00> : vector<16x256xf32>
    %41 = tpu.matmul %29, %40, %cst_19 {dimension_numbers = #tpu.dot_dimension_numbers<[1], [1], [0], [0], [0, 0, 1, 0], [], []>} : vector<16x256xf32>, vector<256x256xf32>, vector<16x256xf32> -> vector<16x256xf32>
    %42 = vector.extract_strided_slice %24 {offsets = [0, 0], sizes = [16, 32], strides = [1, 1]} : vector<32x32xf32> to vector<16x32xf32>
    %cst_20 = arith.constant dense<0.000000e+00> : vector<32x256xf32>
    %43 = tpu.matmul %42, %41, %cst_20 {dimension_numbers = #tpu.dot_dimension_numbers<[0], [0], [1], [1], [0, 1, 1, 1], [], []>} : vector<16x32xf32>, vector<16x256xf32>, vector<32x256xf32> -> vector<32x256xf32>
    %44 = vector.extract_strided_slice %23 {offsets = [48, 0], sizes = [16, 256], strides = [1, 1]} : vector<96x256xf32> to vector<16x256xf32>
    %cst_21 = arith.constant 0.176776692 : f32
    %45 = vector.broadcast %cst_21 : f32 to vector<16x256xf32>
    %46 = arith.mulf %44, %45 : vector<16x256xf32>
    %47 = vector.extract_strided_slice %23 {offsets = [64, 0], sizes = [16, 256], strides = [1, 1]} : vector<96x256xf32> to vector<16x256xf32>
    %48 = vector.extract_strided_slice %23 {offsets = [80, 0], sizes = [16, 256], strides = [1, 1]} : vector<96x256xf32> to vector<16x256xf32>
    %cst_22 = arith.constant dense<0.000000e+00> : vector<256x256xf32>
    %49 = tpu.matmul %46, %47, %cst_22 {dimension_numbers = #tpu.dot_dimension_numbers<[0], [0], [1], [1], [0, 1, 1, 1], [], []>} : vector<16x256xf32>, vector<16x256xf32>, vector<256x256xf32> -> vector<256x256xf32>
    %cst_23 = arith.constant dense<0xFF800000> : vector<256xf32>
    %50 = vector.multi_reduction <maximumf>, %49, %cst_23 [1] : vector<256x256xf32> to vector<256xf32>
    %51 = vector.shape_cast %50 : vector<256xf32> to vector<256x1xf32>
    %52 = vector.broadcast %51 : vector<256x1xf32> to vector<256x256xf32>
    %53 = arith.subf %49, %52 : vector<256x256xf32>
    %54 = math.exp %53 : vector<256x256xf32>
    %cst_24 = arith.constant dense<0.000000e+00> : vector<256xf32>
    %55 = vector.multi_reduction <add>, %54, %cst_24 [1] : vector<256x256xf32> to vector<256xf32>
    %56 = vector.shape_cast %55 : vector<256xf32> to vector<256x1xf32>
    %57 = tpu.reciprocal %56 {approx = true} : vector<256x1xf32> -> vector<256x1xf32>
    %58 = vector.broadcast %57 : vector<256x1xf32> to vector<256x256xf32>
    %59 = arith.mulf %54, %58 : vector<256x256xf32>
    %cst_25 = arith.constant dense<0.000000e+00> : vector<16x256xf32>
    %60 = tpu.matmul %48, %59, %cst_25 {dimension_numbers = #tpu.dot_dimension_numbers<[1], [1], [0], [0], [0, 0, 1, 0], [], []>} : vector<16x256xf32>, vector<256x256xf32>, vector<16x256xf32> -> vector<16x256xf32>
    %61 = vector.extract_strided_slice %24 {offsets = [16, 0], sizes = [16, 32], strides = [1, 1]} : vector<32x32xf32> to vector<16x32xf32>
    %cst_26 = arith.constant dense<0.000000e+00> : vector<32x256xf32>
    %62 = tpu.matmul %61, %60, %cst_26 {dimension_numbers = #tpu.dot_dimension_numbers<[0], [0], [1], [1], [0, 1, 1, 1], [], []>} : vector<16x32xf32>, vector<16x256xf32>, vector<32x256xf32> -> vector<32x256xf32>
    %63 = arith.addf %43, %62 : vector<32x256xf32>
    %c0_27 = arith.constant 0 : index
    %c0_28 = arith.constant 0 : index
    %64 = vector.load %arg6[%c0_27, %c0_28] : memref<32x1xf32, #tpu.memory_space<vmem>>, vector<32x1xf32>
    %65 = vector.broadcast %64 : vector<32x1xf32> to vector<32x256xf32>
    %66 = arith.addf %63, %65 : vector<32x256xf32>
    %67 = arith.addf %66, %1 : vector<32x256xf32>
    %c0_29 = arith.constant 0 : index
    %c0_30 = arith.constant 0 : index
    %c0_31 = arith.constant 0 : index
    %68 = vector.load %arg7[%c0_29, %c0_30, %c0_31] : memref<1x32x256xf32, #tpu.memory_space<vmem>>, vector<1x32x256xf32>
    %69 = vector.shape_cast %68 : vector<1x32x256xf32> to vector<32x256xf32>
    %70 = vector.shape_cast %67 : vector<32x256xf32> to vector<1x32x256xf32>
    tpu.vector_store %arg7[%c0_29, %c0_30, %c0_31], %70 {strides = array<i32>} : memref<1x32x256xf32, #tpu.memory_space<vmem>>, vector<1x32x256xf32>,
    return
  }
  func.func @transform_0(%arg0: i32) -> (i32, i32, i32) {
    %c0_i32 = arith.constant 0 : i32
    %c0_i32_0 = arith.constant 0 : i32
    %c0_i32_1 = arith.constant 0 : i32
    return %arg0, %c0_i32, %c0_i32_0 : i32, i32, i32
  }
  func.func @transform_1(%arg0: i32) -> (i32, i32) {
    %c0_i32 = arith.constant 0 : i32
    %c0_i32_0 = arith.constant 0 : i32
    %c0_i32_1 = arith.constant 0 : i32
    return %c0_i32, %c0_i32_0 : i32, i32
  }
  func.func @transform_2(%arg0: i32) -> (i32, i32) {
    %c0_i32 = arith.constant 0 : i32
    %c0_i32_0 = arith.constant 0 : i32
    %c0_i32_1 = arith.constant 0 : i32
    return %c0_i32, %c0_i32_0 : i32, i32
  }
  func.func @transform_3(%arg0: i32) -> (i32, i32) {
    %c0_i32 = arith.constant 0 : i32
    %c0_i32_0 = arith.constant 0 : i32
    %c0_i32_1 = arith.constant 0 : i32
    return %c0_i32, %c0_i32_0 : i32, i32
  }
  func.func @transform_4(%arg0: i32) -> (i32, i32) {
    %c0_i32 = arith.constant 0 : i32
    %c0_i32_0 = arith.constant 0 : i32
    %c0_i32_1 = arith.constant 0 : i32
    return %c0_i32, %c0_i32_0 : i32, i32
  }
  func.func @transform_5(%arg0: i32) -> (i32, i32) {
    %c0_i32 = arith.constant 0 : i32
    %c0_i32_0 = arith.constant 0 : i32
    %c0_i32_1 = arith.constant 0 : i32
    return %c0_i32, %c0_i32_0 : i32, i32
  }
  func.func @transform_6(%arg0: i32) -> (i32, i32, i32) {
    %c0_i32 = arith.constant 0 : i32
    %c0_i32_0 = arith.constant 0 : i32
    %c0_i32_1 = arith.constant 0 : i32
    return %arg0, %c0_i32, %c0_i32_0 : i32, i32, i32
  }
}

</mosaic_0001>

<llo_original>
// kernel: tpu_custom_call.1
$region0: #{tpu_custom_call.1}
  #allocation0 [shape = 'u32[]', space=smem, size = 0x4, offset = 0x4, fixed_abs, tag = 'smem constant byte address 0x4 - core index']
  #allocation1 [shape = 'u32[144,128]{1,0:T(1,128)}', space=vmem, size = 0x12000, scoped, tag = 'internal scratch']
  %s0 = inlined_call_operand.vmem [shape: f32[2,32,256], index: 0, kind: input, shape index: {}]
  %s1 = inlined_call_operand.vmem [shape: f32[32,32], index: 1, kind: input, shape index: {}]
  %s2 = inlined_call_operand.vmem [shape: f32[96,32], index: 2, kind: input, shape index: {}]
  %s3 = inlined_call_operand.vmem [shape: f32[96,1], index: 3, kind: input, shape index: {}]
  %s4 = inlined_call_operand.vmem [shape: f32[32,32], index: 4, kind: input, shape index: {}]
  %s5 = inlined_call_operand.vmem [shape: f32[32,1], index: 5, kind: input, shape index: {}]
  %s6 = inlined_call_operand.hbm [shape: f32[2,32,256], index: 6, kind: output, shape index: {}]
  %s7 = sld [smem:[#allocation0]]
  $region57: #{tpu_custom_call.1} parent=0
    _
  %s9 = ssub.s32 1, %s7
  %s10 = scalar_select 0, %s9, %s7
  $region1: #{tpu_custom_call.1} parent=0
    #allocation2 [shape = 'u8[65536]{0}', space=vmem, size = 0x10000, scoped, tag = 'output window, operand 0']
    #allocation3 [shape = 's32[2]{0}', space=sflag, size = 0x8, scoped, tag = 'scoped memory for tpu_custom_call.1']
    %11 = vsyncpa [#allocation3], 0
    %s12 = scalar_lea.sflag [#allocation3], 1
    %13 = vsyncpa %s12, 0
    loop: start=0, step=1, limit=4
    $region2: #{tpu_custom_call.1} parent=1 // loop_pre_header
      _
    $region3: #{tpu_custom_call.1} parent=1 // loop_header
      %s15 = sphi 0, %s19
      %p16 = scmp.ge.s32.totalorder %s15, 4
      %s25 = sphi 0, %s27
      %s28 = sphi 0, %s25
      %s29 = sphi 0, %s28
      %s45 = sphi 0, %s29
      %s49 = sphi 0, %s49
      %s51 = sphi 0, %s49
      %s52 = sphi 0, %s51
      %s66 = sphi 0, %s52
      %s70 = sphi 0, %s70
      %s72 = sphi 0, %s70
      %s73 = sphi 0, %s72
      %s87 = sphi 0, %s73
      %s91 = sphi 0, %s91
      %s93 = sphi 0, %s91
      %s94 = sphi 0, %s93
      %s108 = sphi 0, %s94
      %s112 = sphi 0, %s112
      %s114 = sphi 0, %s112
      %s115 = sphi 0, %s114
      %s129 = sphi 0, %s115
      %s133 = sphi 0, %s133
      %s135 = sphi 0, %s133
      %s136 = sphi 0, %s135
      %s150 = sphi 0, %s136
      %s156 = sphi 0, %s158
      %s159 = sphi 0, %s156
      %s160 = sphi 0, %s159
      %s176 = sphi 0, %s160
    $region4: #{tpu_custom_call.1} parent=1 // loop_header_branch
      %18 = sbr.rel (%p16) target = $region8
    $region5: #{tpu_custom_call.1} parent=1 // loop_body
      %s20 = ssub.s32 %s15, 1
      %s21 = ssub.s32 %s15, 2
      %s22 = sadd.s32 %s15, 1
      %s23 = ssub.s32 %s15, %s22
      %p24 = scmp.eq.s32.totalorder %s23, 0
      %s26 = sadd.s32 %s25, 1
      %s27 = scalar_select %p24, %s25, %s26
      %p30 = pneg %p24
      %p31 = scmp.eq.s32.totalorder %s15, 1
      %p32 = por %p30, %p31
      %p33 = scmp.ne.s32.totalorder %s25, %s28
      %p34 = scmp.eq.s32.totalorder %s15, 0
      %p35 = por %p33, %p34
      %p36 = scmp.ne.s32.totalorder %s25, %s28
      %p37 = scmp.eq.s32.totalorder %s20, 1
      %p38 = por %p36, %p37
      %p39 = scmp.ne.s32.totalorder %s28, %s29
      %p40 = scmp.eq.s32.totalorder %s20, 0
      %p41 = por %p39, %p40
      %p42 = scmp.ne.s32.totalorder %s28, %s29
      %p43 = scmp.eq.s32.totalorder %s21, 1
      %p44 = por %p42, %p43
      %p46 = scmp.ne.s32.totalorder %s29, %s45
      %p47 = scmp.eq.s32.totalorder %s21, 0
      %p48 = por %p46, %p47
      %s50 = sadd.s32 %s49, 1
      %p53 = scmp.eq.s32.totalorder %s15, 1
      %p54 = scmp.ne.s32.totalorder %s49, %s51
      %p55 = scmp.eq.s32.totalorder %s15, 0
      %p56 = por %p54, %p55
      %p57 = scmp.ne.s32.totalorder %s49, %s51
      %p58 = scmp.eq.s32.totalorder %s20, 1
      %p59 = por %p57, %p58
      %p60 = scmp.ne.s32.totalorder %s51, %s52
      %p61 = scmp.eq.s32.totalorder %s20, 0
      %p62 = por %p60, %p61
      %p63 = scmp.ne.s32.totalorder %s51, %s52
      %p64 = scmp.eq.s32.totalorder %s21, 1
      %p65 = por %p63, %p64
      %p67 = scmp.ne.s32.totalorder %s52, %s66
      %p68 = scmp.eq.s32.totalorder %s21, 0
      %p69 = por %p67, %p68
      %s71 = sadd.s32 %s70, 1
      %p74 = scmp.eq.s32.totalorder %s15, 1
      %p75 = scmp.ne.s32.totalorder %s70, %s72
      %p76 = scmp.eq.s32.totalorder %s15, 0
      %p77 = por %p75, %p76
      %p78 = scmp.ne.s32.totalorder %s70, %s72
      %p79 = scmp.eq.s32.totalorder %s20, 1
      %p80 = por %p78, %p79
      %p81 = scmp.ne.s32.totalorder %s72, %s73
      %p82 = scmp.eq.s32.totalorder %s20, 0
      %p83 = por %p81, %p82
      %p84 = scmp.ne.s32.totalorder %s72, %s73
      %p85 = scmp.eq.s32.totalorder %s21, 1
      %p86 = por %p84, %p85
      %p88 = scmp.ne.s32.totalorder %s73, %s87
      %p89 = scmp.eq.s32.totalorder %s21, 0
      %p90 = por %p88, %p89
      %s92 = sadd.s32 %s91, 1
      %p95 = scmp.eq.s32.totalorder %s15, 1
      %p96 = scmp.ne.s32.totalorder %s91, %s93
      %p97 = scmp.eq.s32.totalorder %s15, 0
      %p98 = por %p96, %p97
      %p99 = scmp.ne.s32.totalorder %s91, %s93
      %p100 = scmp.eq.s32.totalorder %s20, 1
      %p101 = por %p99, %p100
      %p102 = scmp.ne.s32.totalorder %s93, %s94
      %p103 = scmp.eq.s32.totalorder %s20, 0
      %p104 = por %p102, %p103
      %p105 = scmp.ne.s32.totalorder %s93, %s94
      %p106 = scmp.eq.s32.totalorder %s21, 1
      %p107 = por %p105, %p106
      %p109 = scmp.ne.s32.totalorder %s94, %s108
      %p110 = scmp.eq.s32.totalorder %s21, 0
      %p111 = por %p109, %p110
      %s113 = sadd.s32 %s112, 1
      %p116 = scmp.eq.s32.totalorder %s15, 1
      %p117 = scmp.ne.s32.totalorder %s112, %s114
      %p118 = scmp.eq.s32.totalorder %s15, 0
      %p119 = por %p117, %p118
      %p120 = scmp.ne.s32.totalorder %s112, %s114
      %p121 = scmp.eq.s32.totalorder %s20, 1
      %p122 = por %p120, %p121
      %p123 = scmp.ne.s32.totalorder %s114, %s115
      %p124 = scmp.eq.s32.totalorder %s20, 0
      %p125 = por %p123, %p124
      %p126 = scmp.ne.s32.totalorder %s114, %s115
      %p127 = scmp.eq.s32.totalorder %s21, 1
      %p128 = por %p126, %p127
      %p130 = scmp.ne.s32.totalorder %s115, %s129
      %p131 = scmp.eq.s32.totalorder %s21, 0
      %p132 = por %p130, %p131
      %s134 = sadd.s32 %s133, 1
      %p137 = scmp.eq.s32.totalorder %s15, 1
      %p138 = scmp.ne.s32.totalorder %s133, %s135
      %p139 = scmp.eq.s32.totalorder %s15, 0
      %p140 = por %p138, %p139
      %p141 = scmp.ne.s32.totalorder %s133, %s135
      %p142 = scmp.eq.s32.totalorder %s20, 1
      %p143 = por %p141, %p142
      %p144 = scmp.ne.s32.totalorder %s135, %s136
      %p145 = scmp.eq.s32.totalorder %s20, 0
      %p146 = por %p144, %p145
      %p147 = scmp.ne.s32.totalorder %s135, %s136
      %p148 = scmp.eq.s32.totalorder %s21, 1
      %p149 = por %p147, %p148
      %p151 = scmp.ne.s32.totalorder %s136, %s150
      %p152 = scmp.eq.s32.totalorder %s21, 0
      %p153 = por %p151, %p152
      %s154 = ssub.s32 %s15, %s22
      %p155 = scmp.eq.s32.totalorder %s154, 0
      %s157 = sadd.s32 %s156, 1
      %s158 = scalar_select %p155, %s156, %s157
      %p161 = pneg %p155
      %p162 = scmp.eq.s32.totalorder %s15, 1
      %p163 = por %p161, %p162
      %p164 = scmp.ne.s32.totalorder %s156, %s159
      %p165 = scmp.eq.s32.totalorder %s15, 0
      %p166 = por %p164, %p165
      %p167 = scmp.ne.s32.totalorder %s156, %s159
      %p168 = scmp.eq.s32.totalorder %s20, 1
      %p169 = por %p167, %p168
      %p170 = scmp.ne.s32.totalorder %s159, %s160
      %p171 = scmp.eq.s32.totalorder %s20, 0
      %p172 = por %p170, %p171
      %p173 = scmp.ne.s32.totalorder %s159, %s160
      %p174 = scmp.eq.s32.totalorder %s21, 1
      %p175 = por %p173, %p174
      %p177 = scmp.ne.s32.totalorder %s160, %s176
      %p178 = scmp.eq.s32.totalorder %s21, 0
      %p179 = por %p177, %p178
      %p180 = scmp.le.s32.totalorder 1, %s15
      %p181 = scmp.lt.s32.totalorder %s15, 3
      %p182 = pnand %p180, %p181
      %p183 = pneg %p182
      // Predicated region
      $region9: #{tpu_custom_call.1} parent=5 // pred_check
        _
      $region10: #{tpu_custom_call.1} parent=5 // pred_check_branch
        %185 = sbr.rel (%p182) target = $region12
      $region11: #{tpu_custom_call.1} parent=5 // pred_region
        %s186 = ssub.s32 %s15, 1
        // Predicated region
        $region13: #{tpu_custom_call.1} parent=11 // pred_check
          %p187 = pneg %p62
        $region14: #{tpu_custom_call.1} parent=11 // pred_check_branch
          %189 = sbr.rel (%p187) target = $region16
        $region15: #{tpu_custom_call.1} parent=11 // pred_region
          _
        $region16: #{tpu_custom_call.1} parent=11 // pred_fallthru
          _
        // Predicated region
        $region17: #{tpu_custom_call.1} parent=11 // pred_check
          %p190 = pneg %p83
        $region18: #{tpu_custom_call.1} parent=11 // pred_check_branch
          %192 = sbr.rel (%p190) target = $region20
        $region19: #{tpu_custom_call.1} parent=11 // pred_region
          _
        $region20: #{tpu_custom_call.1} parent=11 // pred_fallthru
          _
        // Predicated region
        $region21: #{tpu_custom_call.1} parent=11 // pred_check
          %p193 = pneg %p104
        $region22: #{tpu_custom_call.1} parent=11 // pred_check_branch
          %195 = sbr.rel (%p193) target = $region24
        $region23: #{tpu_custom_call.1} parent=11 // pred_region
          _
        $region24: #{tpu_custom_call.1} parent=11 // pred_fallthru
          _
        // Predicated region
        $region25: #{tpu_custom_call.1} parent=11 // pred_check
          %p196 = pneg %p125
        $region26: #{tpu_custom_call.1} parent=11 // pred_check_branch
          %198 = sbr.rel (%p196) target = $region28
        $region27: #{tpu_custom_call.1} parent=11 // pred_region
          _
        $region28: #{tpu_custom_call.1} parent=11 // pred_fallthru
          _
        // Predicated region
        $region29: #{tpu_custom_call.1} parent=11 // pred_check
          %p199 = pneg %p146
        $region30: #{tpu_custom_call.1} parent=11 // pred_check_branch
          %201 = sbr.rel (%p199) target = $region32
        $region31: #{tpu_custom_call.1} parent=11 // pred_region
          _
        $region32: #{tpu_custom_call.1} parent=11 // pred_fallthru
          _
      $region12: #{tpu_custom_call.1} parent=5 // pred_fallthru
        _
      %p202 = scmp.lt.s32.totalorder %s15, 2
      // Predicated region
      $region33: #{tpu_custom_call.1} parent=5 // pred_check
        %p203 = pneg %p202
      $region34: #{tpu_custom_call.1} parent=5 // pred_check_branch
        %205 = sbr.rel (%p203) target = $region36
      $region35: #{tpu_custom_call.1} parent=5 // pred_region
        // Predicated region
        $region37: #{tpu_custom_call.1} parent=35 // pred_check
          %p206 = pneg %p35
        $region38: #{tpu_custom_call.1} parent=35 // pred_check_branch
          %208 = sbr.rel (%p206) target = $region40
        $region39: #{tpu_custom_call.1} parent=35 // pred_region
          %p209 = scmp.lt.s32.totalorder %s15, 1
          %s210 = scalar_select %p209, %s15, 1
          %s211 = smul.addr %s210, 8
          %s212 = smul.addr %s211, 8
          %s213 = scalar_lea.vmem %s0, %s212
        $region40: #{tpu_custom_call.1} parent=35 // pred_fallthru
          _
      $region36: #{tpu_custom_call.1} parent=5 // pred_fallthru
        _
      %p214 = scmp.le.s32.totalorder 1, %s15
      %p215 = scmp.lt.s32.totalorder %s15, 3
      %p216 = pnand %p214, %p215
      %p217 = pneg %p216
      // Predicated region
      $region41: #{tpu_custom_call.1} parent=5 // pred_check
        _
      $region42: #{tpu_custom_call.1} parent=5 // pred_check_branch
        %219 = sbr.rel (%p216) target = $region44
      $region43: #{tpu_custom_call.1} parent=5 // pred_region
        %s220 = ssub.s32 %s15, 1
        %p221 = scmp.lt.s32.totalorder %s20, 1
        %s222 = scalar_select %p221, %s20, 1
        %s223 = smul.addr %s222, 8
        %s224 = smul.addr %s223, 8
        %s225 = scalar_lea.vmem %s0, %s224
        %p226 = pneg %p41
        %p227 = pneg %p38
        %p228 = pneg %p62
        %p229 = pneg %p59
        %p230 = pneg %p83
        %p231 = pneg %p80
        %p232 = pneg %p104
        %p233 = pneg %p101
        %p234 = pneg %p125
        %p235 = pneg %p122
        %p236 = pneg %p146
        %p237 = pneg %p143
        %p238 = pneg %p172
        %p239 = pneg %p169
        %s240 = sand.u32 %s159, 1
        %s241 = scalar_lea.sflag [#allocation3], %s240
        %s242 = sand.u32 %s159, 1
        %s243 = smul.addr %s242, 64
        %s244 = scalar_lea.vmem [#allocation2], %s243
        %p245 = scmp.lt.s32.totalorder %s20, 1
        %s246 = scalar_select %p245, %s20, 1
        %s247 = smul.addr %s246, 8
        %s248 = smul.addr %s247, 8
        %s249 = scalar_lea.vmem %s0, %s248
        %v250 = vld [vmem:[%s249] sm:$0xff]
        %v251 = vld [vmem:[%s249 + $0x8] sm:$0xff]
        %v252 = vld [vmem:[%s249 + $0x10] sm:$0xff]
        %v253 = vld [vmem:[%s249 + $0x18] sm:$0xff]
        %v254 = vld [vmem:[%s249 + $0x20] sm:$0xff]
        %v255 = vld [vmem:[%s249 + $0x28] sm:$0xff]
        %v256 = vld [vmem:[%s249 + $0x30] sm:$0xff]
        %v257 = vld [vmem:[%s249 + $0x38] sm:$0xff]
        %v258 = vld [vmem:[%s1] sm:$0xff]
        %v259 = vld [vmem:[%s1 + $0x8] sm:$0xff]
        %v260 = vld [vmem:[%s1 + $0x10] sm:$0xff]
        %v261 = vld [vmem:[%s1 + $0x18] sm:$0xff]
        %v262 = vadd.f32 %v250, %v251
        %263 = vadd.xlane.f32.xlu0 %v262
        %v264 = vpop.xlane.xlu0 %263
        %v265 = vadd.f32 %v252, %v253
        %266 = vadd.xlane.f32.xlu0 %v265
        %v267 = vpop.xlane.xlu0 %266
        %v268 = vadd.f32 %v254, %v255
        %269 = vadd.xlane.f32.xlu0 %v268
        %v270 = vpop.xlane.xlu0 %269
        %v271 = vadd.f32 %v256, %v257
        %272 = vadd.xlane.f32.xlu0 %v271
        %v273 = vpop.xlane.xlu0 %272
        %v274 = vmul.f32 %v250, %v250
        %v275 = vmul.f32 %v251, %v251
        %v276 = vmul.f32 %v252, %v252
        %v277 = vmul.f32 %v253, %v253
        %v278 = vmul.f32 %v254, %v254
        %v279 = vmul.f32 %v255, %v255
        %v280 = vmul.f32 %v256, %v256
        %v281 = vmul.f32 %v257, %v257
        %v282 = vadd.f32 %v274, %v275
        %283 = vadd.xlane.f32.xlu0 %v282
        %v284 = vpop.xlane.xlu0 %283
        %v285 = vadd.f32 %v276, %v277
        %286 = vadd.xlane.f32.xlu0 %v285
        %v287 = vpop.xlane.xlu0 %286
        %v288 = vadd.f32 %v278, %v279
        %289 = vadd.xlane.f32.xlu0 %v288
        %v290 = vpop.xlane.xlu0 %289
        %v291 = vadd.f32 %v280, %v281
        %292 = vadd.xlane.f32.xlu0 %v291
        %v293 = vpop.xlane.xlu0 %292
        %vm294 = vcmask 261120
        %v296 = vsel %vm294, %v258, 0
        %v299 = vsel %vm294, %v259, 0
        %v302 = vsel %vm294, %v260, 0
        %v305 = vsel %vm294, %v261, 0
        %307 = vmatprep.subr.mxu0 0.0
        %308 = vmatpush1.msra.mxu0 %v264
        %309 = vmatprep.subr.mxu0 0.0
        %310 = vmatpush1.msra.mxu0 %v267
        %311 = vmatprep.subr.mxu0 0.0
        %312 = vmatpush1.msra.mxu0 %v270
        %313 = vmatprep.subr.mxu0 0.0
        %314 = vmatpush1.msra.mxu0 %v273
        %315 = vmatprep.subr.mxu0 0.0
        %316 = vmatpush1.msra.mxu0 0.0
        %317 = vmatprep.subr.mxu0 0.0
        %318 = vmatpush1.msra.mxu0 0.0
        %319 = vmatprep.subr.mxu0 0.0
        %320 = vmatpush1.msra.mxu0 0.0
        %321 = vmatprep.subr.mxu0 0.0
        %322 = vmatpush1.msra.mxu0 0.0
        %323 = vmatprep.subr.mxu0 0.0
        %324 = vmatpush1.msra.mxu0 0.0
        %325 = vmatprep.subr.mxu0 0.0
        %326 = vmatpush1.msra.mxu0 0.0
        %327 = vmatprep.subr.mxu0 0.0
        %328 = vmatpush1.msra.mxu0 0.0
        %329 = vmatprep.subr.mxu0 0.0
        %330 = vmatpush1.msra.mxu0 0.0
        %331 = vmatprep.subr.mxu0 0.0
        %332 = vmatpush1.msra.mxu0 0.0
        %333 = vmatprep.subr.mxu0 0.0
        %334 = vmatpush1.msra.mxu0 0.0
        %335 = vmatprep.subr.mxu0 0.0
        %336 = vmatpush1.msra.mxu0 0.0
        %337 = vmatprep.subr.mxu0 0.0
        %338 = vmatpush1.msra.mxu0 0.0
        %339 = vmatprep.subr.mxu0 0.0
        %340 = vmatpush1.msra.mxu0 0.0
        %341 = vmatprep.subr.mxu0 0.0
        %342 = vmatpush1.msra.mxu0 0.0
        %343 = vmatprep.subr.mxu0 0.0
        %344 = vmatpush1.msra.mxu0 0.0
        %345 = vmatprep.subr.mxu0 0.0
        %346 = vmatpush1.msra.mxu0 0.0
        %347 = vmatprep.subr.mxu0 0.0
        %348 = vmatpush1.msra.mxu0 0.0
        %349 = vmatprep.subr.mxu0 0.0
        %350 = vmatpush1.msra.mxu0 0.0
        %351 = vmatprep.subr.mxu0 0.0
        %352 = vmatpush1.msra.mxu0 0.0
        %353 = vmatprep.subr.mxu0 0.0
        %354 = vmatpush1.msra.mxu0 0.0
        %355 = vmatprep.subr.mxu0 0.0
        %356 = vmatpush1.msra.mxu0 0.0
        %357 = vmatprep.subr.mxu0 0.0
        %358 = vmatpush1.msra.mxu0 0.0
        %359 = vmatprep.subr.mxu0 0.0
        %360 = vmatpush1.msra.mxu0 0.0
        %361 = vmatprep.subr.mxu0 0.0
        %362 = vmatpush1.msra.mxu0 0.0
        %363 = vmatprep.subr.mxu0 0.0
        %364 = vmatpush1.msra.mxu0 0.0
        %365 = vmatprep.subr.mxu0 0.0
        %366 = vmatpush1.msra.mxu0 0.0
        %367 = vmatprep.subr.mxu0 0.0
        %368 = vmatpush1.msra.mxu0 0.0
        %369 = vmatprep.subr.mxu0 0.0
        %370 = vmatpush1.msra.mxu0 0.0
        %371 = vmatprep.mubr.f32.mxu0 0.0
        %372 = vmatmul.mubr.f32.gmra.mrb[0].mxu0 %v296
        %v373 = vpop.f32.mrb[0].mxu0
        %v374 = vadd.f32 0.0, %v373
        %v375 = vpop.f32.mrb[0].mxu0
        %376 = vmatprep.mubr.f32.mxu0 0.0
        %377 = vmatmul.mubr.f32.gmra.mrb[0].mxu0 %v299
        %v378 = vpop.f32.mrb[0].mxu0
        %v379 = vadd.f32 0.0, %v378
        %v380 = vpop.f32.mrb[0].mxu0
        %381 = vmatprep.mubr.f32.mxu0 0.0
        %382 = vmatmul.mubr.f32.gmra.mrb[0].mxu0 %v302
        %v383 = vpop.f32.mrb[0].mxu0
        %v384 = vadd.f32 0.0, %v383
        %v385 = vpop.f32.mrb[0].mxu0
        %386 = vmatprep.mubr.f32.mxu0 0.0
        %387 = vmatmul.mubr.f32.gmra.mrb[0].mxu0 %v305
        %v388 = vpop.f32.mrb[0].mxu0
        %v389 = vadd.f32 0.0, %v388
        %v390 = vpop.f32.mrb[0].mxu0
        %391 = vdwg.mxu0
        %392 = vmatprep.subr.mxu0 0.0
        %393 = vmatpush1.msra.mxu0 %v284
        %394 = vmatprep.subr.mxu0 0.0
        %395 = vmatpush1.msra.mxu0 %v287
        %396 = vmatprep.subr.mxu0 0.0
        %397 = vmatpush1.msra.mxu0 %v290
        %398 = vmatprep.subr.mxu0 0.0
        %399 = vmatpush1.msra.mxu0 %v293
        %400 = vmatprep.subr.mxu0 0.0
        %401 = vmatpush1.msra.mxu0 0.0
        %402 = vmatprep.subr.mxu0 0.0
        %403 = vmatpush1.msra.mxu0 0.0
        %404 = vmatprep.subr.mxu0 0.0
        %405 = vmatpush1.msra.mxu0 0.0
        %406 = vmatprep.subr.mxu0 0.0
        %407 = vmatpush1.msra.mxu0 0.0
        %408 = vmatprep.subr.mxu0 0.0
        %409 = vmatpush1.msra.mxu0 0.0
        %410 = vmatprep.subr.mxu0 0.0
        %411 = vmatpush1.msra.mxu0 0.0
        %412 = vmatprep.subr.mxu0 0.0
        %413 = vmatpush1.msra.mxu0 0.0
        %414 = vmatprep.subr.mxu0 0.0
        %415 = vmatpush1.msra.mxu0 0.0
        %416 = vmatprep.subr.mxu0 0.0
        %417 = vmatpush1.msra.mxu0 0.0
        %418 = vmatprep.subr.mxu0 0.0
        %419 = vmatpush1.msra.mxu0 0.0
        %420 = vmatprep.subr.mxu0 0.0
        %421 = vmatpush1.msra.mxu0 0.0
        %422 = vmatprep.subr.mxu0 0.0
        %423 = vmatpush1.msra.mxu0 0.0
        %424 = vmatprep.subr.mxu0 0.0
        %425 = vmatpush1.msra.mxu0 0.0
        %426 = vmatprep.subr.mxu0 0.0
        %427 = vmatpush1.msra.mxu0 0.0
        %428 = vmatprep.subr.mxu0 0.0
        %429 = vmatpush1.msra.mxu0 0.0
        %430 = vmatprep.subr.mxu0 0.0
        %431 = vmatpush1.msra.mxu0 0.0
        %432 = vmatprep.subr.mxu0 0.0
        %433 = vmatpush1.msra.mxu0 0.0
        %434 = vmatprep.subr.mxu0 0.0
        %435 = vmatpush1.msra.mxu0 0.0
        %436 = vmatprep.subr.mxu0 0.0
        %437 = vmatpush1.msra.mxu0 0.0
        %438 = vmatprep.subr.mxu0 0.0
        %439 = vmatpush1.msra.mxu0 0.0
        %440 = vmatprep.subr.mxu0 0.0
        %441 = vmatpush1.msra.mxu0 0.0
        %442 = vmatprep.subr.mxu0 0.0
        %443 = vmatpush1.msra.mxu0 0.0
        %444 = vmatprep.subr.mxu0 0.0
        %445 = vmatpush1.msra.mxu0 0.0
        %446 = vmatprep.subr.mxu0 0.0
        %447 = vmatpush1.msra.mxu0 0.0
        %448 = vmatprep.subr.mxu0 0.0
        %449 = vmatpush1.msra.mxu0 0.0
        %450 = vmatprep.subr.mxu0 0.0
        %451 = vmatpush1.msra.mxu0 0.0
        %452 = vmatprep.subr.mxu0 0.0
        %453 = vmatpush1.msra.mxu0 0.0
        %454 = vmatprep.subr.mxu0 0.0
        %455 = vmatpush1.msra.mxu0 0.0
        %456 = vmatprep.mubr.f32.mxu0 0.0
        %457 = vmatmul.mubr.f32.gmra.mrb[0].mxu0 %v296
        %v458 = vpop.f32.mrb[0].mxu0
        %v459 = vadd.f32 0.0, %v458
        %v460 = vpop.f32.mrb[0].mxu0
        %461 = vmatprep.mubr.f32.mxu0 0.0
        %462 = vmatmul.mubr.f32.gmra.mrb[0].mxu0 %v299
        %v463 = vpop.f32.mrb[0].mxu0
        %v464 = vadd.f32 0.0, %v463
        %v465 = vpop.f32.mrb[0].mxu0
        %466 = vmatprep.mubr.f32.mxu0 0.0
        %467 = vmatmul.mubr.f32.gmra.mrb[0].mxu0 %v302
        %v468 = vpop.f32.mrb[0].mxu0
        %v469 = vadd.f32 0.0, %v468
        %v470 = vpop.f32.mrb[0].mxu0
        %471 = vmatprep.mubr.f32.mxu0 0.0
        %472 = vmatmul.mubr.f32.gmra.mrb[0].mxu0 %v305
        %v473 = vpop.f32.mrb[0].mxu0
        %v474 = vadd.f32 0.0, %v473
        %v475 = vpop.f32.mrb[0].mxu0
        %476 = vdwg.mxu0
        %v477 = vmul.f32 %v374, %v374
        %v478 = vmul.f32 %v379, %v379
        %v479 = vmul.f32 %v384, %v384
        %v480 = vmul.f32 %v389, %v389
        %v481 = vsub.f32 %v459, %v477
        %v482 = vsub.f32 %v464, %v478
        %v483 = vsub.f32 %v469, %v479
        %v484 = vsub.f32 %v474, %v480
        %486 = vset.pattern.permute.xlu0 0
        %487 = vperm.xlu0 %486, %v374
        %v488 = vpop.permute.xlu0 %487
        %491 = vset.pattern.permute.xlu0 0
        %492 = vperm.xlu0 %491, %v379
        %v493 = vpop.permute.xlu0 %492
        %496 = vset.pattern.permute.xlu0 0
        %497 = vperm.xlu0 %496, %v384
        %v498 = vpop.permute.xlu0 %497
        %501 = vset.pattern.permute.xlu0 0
        %502 = vperm.xlu0 %501, %v389
        %v503 = vpop.permute.xlu0 %502
        %v505 = vsub.f32 %v250, %v488
        %v506 = vsub.f32 %v251, %v488
        %v507 = vsub.f32 %v252, %v493
        %v508 = vsub.f32 %v253, %v493
        %v509 = vsub.f32 %v254, %v498
        %v510 = vsub.f32 %v255, %v498
        %v511 = vsub.f32 %v256, %v503
        %v512 = vsub.f32 %v257, %v503
        %v513 = vadd.f32 %v481, 1e-05
        %v514 = vadd.f32 %v482, 1e-05
        %v515 = vadd.f32 %v483, 1e-05
        %v516 = vadd.f32 %v484, 1e-05
        %v517 = vrsqrt.pop %v513
        %v518 = vrsqrt.pop %v514
        %v519 = vrsqrt.pop %v515
        %v520 = vrsqrt.pop %v516
        %522 = vset.pattern.permute.xlu0 0
        %523 = vperm.xlu0 %522, %v517
        %v524 = vpop.permute.xlu0 %523
        %527 = vset.pattern.permute.xlu0 0
        %528 = vperm.xlu0 %527, %v518
        %v529 = vpop.permute.xlu0 %528
        %532 = vset.pattern.permute.xlu0 0
        %533 = vperm.xlu0 %532, %v519
        %v534 = vpop.permute.xlu0 %533
        %537 = vset.pattern.permute.xlu0 0
        %538 = vperm.xlu0 %537, %v520
        %v539 = vpop.permute.xlu0 %538
        %v541 = vmul.f32 %v505, %v524
        %v542 = vmul.f32 %v506, %v524
        %v543 = vmul.f32 %v507, %v529
        %v544 = vmul.f32 %v508, %v529
        %v545 = vmul.f32 %v509, %v534
        %v546 = vmul.f32 %v510, %v534
        %v547 = vmul.f32 %v511, %v539
        %v548 = vmul.f32 %v512, %v539
        %v549 = vld [vmem:[%s2] sm:$0xff]
        %v550 = vld [vmem:[%s2 + $0x8] sm:$0xff]
        %v551 = vld [vmem:[%s2 + $0x10] sm:$0xff]
        %v552 = vld [vmem:[%s2 + $0x18] sm:$0xff]
        %v553 = vld [vmem:[%s2 + $0x20] sm:$0xff]
        %v554 = vld [vmem:[%s2 + $0x28] sm:$0xff]
        %v555 = vld [vmem:[%s2 + $0x30] sm:$0xff]
        %v556 = vld [vmem:[%s2 + $0x38] sm:$0xff]
        %v557 = vld [vmem:[%s2 + $0x40] sm:$0xff]
        %v558 = vld [vmem:[%s2 + $0x48] sm:$0xff]
        %v559 = vld [vmem:[%s2 + $0x50] sm:$0xff]
        %v560 = vld [vmem:[%s2 + $0x58] sm:$0xff]
        %v561 = vld [vmem:[%s3] sm:$0xff]
        %v562 = vld [vmem:[%s3 + $0x8] sm:$0xff]
        %v563 = vld [vmem:[%s3 + $0x10] sm:$0xff]
        %v564 = vld [vmem:[%s3 + $0x18] sm:$0xff]
        %v565 = vld [vmem:[%s3 + $0x20] sm:$0xff]
        %v566 = vld [vmem:[%s3 + $0x28] sm:$0xff]
        %v567 = vld [vmem:[%s3 + $0x30] sm:$0xff]
        %v568 = vld [vmem:[%s3 + $0x38] sm:$0xff]
        %v569 = vld [vmem:[%s3 + $0x40] sm:$0xff]
        %v570 = vld [vmem:[%s3 + $0x48] sm:$0xff]
        %v571 = vld [vmem:[%s3 + $0x50] sm:$0xff]
        %v572 = vld [vmem:[%s3 + $0x58] sm:$0xff]
        %574 = vset.pattern.permute.xlu0 0
        %575 = vperm.xlu0 %574, %v561
        %v576 = vpop.permute.xlu0 %575
        %579 = vset.pattern.permute.xlu0 0
        %580 = vperm.xlu0 %579, %v562
        %v581 = vpop.permute.xlu0 %580
        %584 = vset.pattern.permute.xlu0 0
        %585 = vperm.xlu0 %584, %v563
        %v586 = vpop.permute.xlu0 %585
        %589 = vset.pattern.permute.xlu0 0
        %590 = vperm.xlu0 %589, %v564
        %v591 = vpop.permute.xlu0 %590
        %594 = vset.pattern.permute.xlu0 0
        %595 = vperm.xlu0 %594, %v565
        %v596 = vpop.permute.xlu0 %595
        %599 = vset.pattern.permute.xlu0 0
        %600 = vperm.xlu0 %599, %v566
        %v601 = vpop.permute.xlu0 %600
        %604 = vset.pattern.permute.xlu0 0
        %605 = vperm.xlu0 %604, %v567
        %v606 = vpop.permute.xlu0 %605
        %609 = vset.pattern.permute.xlu0 0
        %610 = vperm.xlu0 %609, %v568
        %v611 = vpop.permute.xlu0 %610
        %614 = vset.pattern.permute.xlu0 0
        %615 = vperm.xlu0 %614, %v569
        %v616 = vpop.permute.xlu0 %615
        %619 = vset.pattern.permute.xlu0 0
        %620 = vperm.xlu0 %619, %v570
        %v621 = vpop.permute.xlu0 %620
        %624 = vset.pattern.permute.xlu0 0
        %625 = vperm.xlu0 %624, %v571
        %v626 = vpop.permute.xlu0 %625
        %629 = vset.pattern.permute.xlu0 0
        %630 = vperm.xlu0 %629, %v572
        %v631 = vpop.permute.xlu0 %630
        %v634 = vsel %vm294, %v549, 0
        %v637 = vsel %vm294, %v550, 0
        %v640 = vsel %vm294, %v551, 0
        %v643 = vsel %vm294, %v552, 0
        %v646 = vsel %vm294, %v553, 0
        %v649 = vsel %vm294, %v554, 0
        %v652 = vsel %vm294, %v555, 0
        %v655 = vsel %vm294, %v556, 0
        %v658 = vsel %vm294, %v557, 0
        %v661 = vsel %vm294, %v558, 0
        %v664 = vsel %vm294, %v559, 0
        %v667 = vsel %vm294, %v560, 0
        %669 = vmatprep.subr.mxu0 %v542
        %670 = vmatpush1.msra.mxu0 %v541
        %671 = vmatprep.subr.mxu0 %v544
        %672 = vmatpush1.msra.mxu0 %v543
        %673 = vmatprep.subr.mxu0 %v546
        %674 = vmatpush1.msra.mxu0 %v545
        %675 = vmatprep.subr.mxu0 %v548
        %676 = vmatpush1.msra.mxu0 %v547
        %677 = vmatprep.subr.mxu0 0.0
        %678 = vmatpush1.msra.mxu0 0.0
        %679 = vmatprep.subr.mxu0 0.0
        %680 = vmatpush1.msra.mxu0 0.0
        %681 = vmatprep.subr.mxu0 0.0
        %682 = vmatpush1.msra.mxu0 0.0
        %683 = vmatprep.subr.mxu0 0.0
        %684 = vmatpush1.msra.mxu0 0.0
        %685 = vmatprep.subr.mxu0 0.0
        %686 = vmatpush1.msra.mxu0 0.0
        %687 = vmatprep.subr.mxu0 0.0
        %688 = vmatpush1.msra.mxu0 0.0
        %689 = vmatprep.subr.mxu0 0.0
        %690 = vmatpush1.msra.mxu0 0.0
        %691 = vmatprep.subr.mxu0 0.0
        %692 = vmatpush1.msra.mxu0 0.0
        %693 = vmatprep.subr.mxu0 0.0
        %694 = vmatpush1.msra.mxu0 0.0
        %695 = vmatprep.subr.mxu0 0.0
        %696 = vmatpush1.msra.mxu0 0.0
        %697 = vmatprep.subr.mxu0 0.0
        %698 = vmatpush1.msra.mxu0 0.0
        %699 = vmatprep.subr.mxu0 0.0
        %700 = vmatpush1.msra.mxu0 0.0
        %701 = vmatprep.subr.mxu0 0.0
        %702 = vmatpush1.msra.mxu0 0.0
        %703 = vmatprep.subr.mxu0 0.0
        %704 = vmatpush1.msra.mxu0 0.0
        %705 = vmatprep.subr.mxu0 0.0
        %706 = vmatpush1.msra.mxu0 0.0
        %707 = vmatprep.subr.mxu0 0.0
        %708 = vmatpush1.msra.mxu0 0.0
        %709 = vmatprep.subr.mxu0 0.0
        %710 = vmatpush1.msra.mxu0 0.0
        %711 = vmatprep.subr.mxu0 0.0
        %712 = vmatpush1.msra.mxu0 0.0
        %713 = vmatprep.subr.mxu0 0.0
        %714 = vmatpush1.msra.mxu0 0.0
        %715 = vmatprep.subr.mxu0 0.0
        %716 = vmatpush1.msra.mxu0 0.0
        %717 = vmatprep.subr.mxu0 0.0
        %718 = vmatpush1.msra.mxu0 0.0
        %719 = vmatprep.subr.mxu0 0.0
        %720 = vmatpush1.msra.mxu0 0.0
        %721 = vmatprep.subr.mxu0 0.0
        %722 = vmatpush1.msra.mxu0 0.0
        %723 = vmatprep.subr.mxu0 0.0
        %724 = vmatpush1.msra.mxu0 0.0
        %725 = vmatprep.subr.mxu0 0.0
        %726 = vmatpush1.msra.mxu0 0.0
        %727 = vmatprep.subr.mxu0 0.0
        %728 = vmatpush1.msra.mxu0 0.0
        %729 = vmatprep.subr.mxu0 0.0
        %730 = vmatpush1.msra.mxu0 0.0
        %731 = vmatprep.subr.mxu0 0.0
        %732 = vmatpush1.msra.mxu0 0.0
        %733 = vmatprep.mubr.f32.mxu0 0.0
        %734 = vmatmul.mubr.f32.gmra.mrb[0].mxu0 %v634
        %v735 = vpop.f32.mrb[0].mxu0
        %v736 = vadd.f32 %v576, %v735
        %v737 = vpop.f32.mrb[0].mxu0
        %v738 = vadd.f32 %v576, %v737
        %739 = vmatprep.mubr.f32.mxu0 0.0
        %740 = vmatmul.mubr.f32.gmra.mrb[0].mxu0 %v637
        %v741 = vpop.f32.mrb[0].mxu0
        %v742 = vadd.f32 %v581, %v741
        %v743 = vpop.f32.mrb[0].mxu0
        %v744 = vadd.f32 %v581, %v743
        %745 = vmatprep.mubr.f32.mxu0 0.0
        %746 = vmatmul.mubr.f32.gmra.mrb[0].mxu0 %v640
        %v747 = vpop.f32.mrb[0].mxu0
        %v748 = vadd.f32 %v586, %v747
        %v749 = vpop.f32.mrb[0].mxu0
        %v750 = vadd.f32 %v586, %v749
        %751 = vmatprep.mubr.f32.mxu0 0.0
        %752 = vmatmul.mubr.f32.gmra.mrb[0].mxu0 %v643
        %v753 = vpop.f32.mrb[0].mxu0
        %v754 = vadd.f32 %v591, %v753
        %v755 = vpop.f32.mrb[0].mxu0
        %v756 = vadd.f32 %v591, %v755
        %757 = vmatprep.mubr.f32.mxu0 0.0
        %758 = vmatmul.mubr.f32.gmra.mrb[0].mxu0 %v646
        %v759 = vpop.f32.mrb[0].mxu0
        %v760 = vadd.f32 %v596, %v759
        %v761 = vpop.f32.mrb[0].mxu0
        %v762 = vadd.f32 %v596, %v761
        %763 = vmatprep.mubr.f32.mxu0 0.0
        %764 = vmatmul.mubr.f32.gmra.mrb[0].mxu0 %v649
        %v765 = vpop.f32.mrb[0].mxu0
        %v766 = vadd.f32 %v601, %v765
        %v767 = vpop.f32.mrb[0].mxu0
        %v768 = vadd.f32 %v601, %v767
        %769 = vmatprep.mubr.f32.mxu0 0.0
        %770 = vmatmul.mubr.f32.gmra.mrb[0].mxu0 %v652
        %v771 = vpop.f32.mrb[0].mxu0
        %v772 = vadd.f32 %v606, %v771
        %v773 = vpop.f32.mrb[0].mxu0
        %v774 = vadd.f32 %v606, %v773
        %775 = vmatprep.mubr.f32.mxu0 0.0
        %776 = vmatmul.mubr.f32.gmra.mrb[0].mxu0 %v655
        %v777 = vpop.f32.mrb[0].mxu0
        %v778 = vadd.f32 %v611, %v777
        %v779 = vpop.f32.mrb[0].mxu0
        %v780 = vadd.f32 %v611, %v779
        %781 = vmatprep.mubr.f32.mxu0 0.0
        %782 = vmatmul.mubr.f32.gmra.mrb[0].mxu0 %v658
        %v783 = vpop.f32.mrb[0].mxu0
        %v784 = vadd.f32 %v616, %v783
        %v785 = vpop.f32.mrb[0].mxu0
        %v786 = vadd.f32 %v616, %v785
        %787 = vmatprep.mubr.f32.mxu0 0.0
        %788 = vmatmul.mubr.f32.gmra.mrb[0].mxu0 %v661
        %v789 = vpop.f32.mrb[0].mxu0
        %v790 = vadd.f32 %v621, %v789
        %v791 = vpop.f32.mrb[0].mxu0
        %v792 = vadd.f32 %v621, %v791
        %793 = vmatprep.mubr.f32.mxu0 0.0
        %794 = vmatmul.mubr.f32.gmra.mrb[0].mxu0 %v664
        %v795 = vpop.f32.mrb[0].mxu0
        %v796 = vadd.f32 %v626, %v795
        %v797 = vpop.f32.mrb[0].mxu0
        %v798 = vadd.f32 %v626, %v797
        %799 = vmatprep.mubr.f32.mxu0 0.0
        %800 = vmatmul.mubr.f32.gmra.mrb[0].mxu0 %v667
        %v801 = vpop.f32.mrb[0].mxu0
        %v802 = vadd.f32 %v631, %v801
        %v803 = vpop.f32.mrb[0].mxu0
        %v804 = vadd.f32 %v631, %v803
        %805 = vdwg.mxu0
        %v806 = vld [vmem:[%s4] sm:$0xff]
        %v807 = vld [vmem:[%s4 + $0x8] sm:$0xff]
        %v808 = vld [vmem:[%s4 + $0x10] sm:$0xff]
        %v809 = vld [vmem:[%s4 + $0x18] sm:$0xff]
        %v810 = vmul.f32 %v736, 0.17677669
        %v811 = vmul.f32 %v738, 0.17677669
        %v812 = vmul.f32 %v742, 0.17677669
        %v813 = vmul.f32 %v744, 0.17677669
        %814 = vxpose.xlu0.b32.start [1/16] %v810, 128
        %815 = vxpose.xlu0.b32.cont [2/16] %v812, 128
        %816 = vxpose.xlu0.b32.cont [3/16] 0.0, 128
        %817 = vxpose.xlu0.b32.cont [4/16] 0.0, 128
        %818 = vxpose.xlu0.b32.cont [5/16] 0.0, 128
        %819 = vxpose.xlu0.b32.cont [6/16] 0.0, 128
        %820 = vxpose.xlu0.b32.cont [7/16] 0.0, 128
        %821 = vxpose.xlu0.b32.cont [8/16] 0.0, 128
        %822 = vxpose.xlu0.b32.cont [9/16] 0.0, 128
        %823 = vxpose.xlu0.b32.cont [10/16] 0.0, 128
        %824 = vxpose.xlu0.b32.cont [11/16] 0.0, 128
        %825 = vxpose.xlu0.b32.cont [12/16] 0.0, 128
        %826 = vxpose.xlu0.b32.cont [13/16] 0.0, 128
        %827 = vxpose.xlu0.b32.cont [14/16] 0.0, 128
        %828 = vxpose.xlu0.b32.cont [15/16] 0.0, 128
        %829 = vxpose.xlu0.b32.end [16/16] 0.0, 128
        %v830 = vpop.trf.xlu0
        %v831 = vpop.trf.xlu0
        %v832 = vpop.trf.xlu0
        %v833 = vpop.trf.xlu0
        %v834 = vpop.trf.xlu0
        %v835 = vpop.trf.xlu0
        %v836 = vpop.trf.xlu0
        %v837 = vpop.trf.xlu0
        %v838 = vpop.trf.xlu0
        %v839 = vpop.trf.xlu0
        %v840 = vpop.trf.xlu0
        %v841 = vpop.trf.xlu0
        %v842 = vpop.trf.xlu0
        %v843 = vpop.trf.xlu0
        %v844 = vpop.trf.xlu0
        %v845 = vpop.trf.xlu0
        %846 = vxpose.xlu0.b32.start [1/16] %v811, 128
        %847 = vxpose.xlu0.b32.cont [2/16] %v813, 128
        %848 = vxpose.xlu0.b32.cont [3/16] 0.0, 128
        %849 = vxpose.xlu0.b32.cont [4/16] 0.0, 128
        %850 = vxpose.xlu0.b32.cont [5/16] 0.0, 128
        %851 = vxpose.xlu0.b32.cont [6/16] 0.0, 128
        %852 = vxpose.xlu0.b32.cont [7/16] 0.0, 128
        %853 = vxpose.xlu0.b32.cont [8/16] 0.0, 128
        %854 = vxpose.xlu0.b32.cont [9/16] 0.0, 128
        %855 = vxpose.xlu0.b32.cont [10/16] 0.0, 128
        %856 = vxpose.xlu0.b32.cont [11/16] 0.0, 128
        %857 = vxpose.xlu0.b32.cont [12/16] 0.0, 128
        %858 = vxpose.xlu0.b32.cont [13/16] 0.0, 128
        %859 = vxpose.xlu0.b32.cont [14/16] 0.0, 128
        %860 = vxpose.xlu0.b32.cont [15/16] 0.0, 128
        %861 = vxpose.xlu0.b32.end [16/16] 0.0, 128
        %v862 = vpop.trf.xlu0
        %v863 = vpop.trf.xlu0
        %v864 = vpop.trf.xlu0
        %v865 = vpop.trf.xlu0
        %v866 = vpop.trf.xlu0
        %v867 = vpop.trf.xlu0
        %v868 = vpop.trf.xlu0
        %v869 = vpop.trf.xlu0
        %v870 = vpop.trf.xlu0
        %v871 = vpop.trf.xlu0
        %v872 = vpop.trf.xlu0
        %v873 = vpop.trf.xlu0
        %v874 = vpop.trf.xlu0
        %v875 = vpop.trf.xlu0
        %v876 = vpop.trf.xlu0
        %v877 = vpop.trf.xlu0
        %vm878 = vcmask 130048
        %v880 = vsel %vm878, %v830, 0
        %v883 = vsel %vm878, %v831, 0
        %v886 = vsel %vm878, %v832, 0
        %v889 = vsel %vm878, %v833, 0
        %v892 = vsel %vm878, %v834, 0
        %v895 = vsel %vm878, %v835, 0
        %v898 = vsel %vm878, %v836, 0
        %v901 = vsel %vm878, %v837, 0
        %v904 = vsel %vm878, %v838, 0
        %v907 = vsel %vm878, %v839, 0
        %v910 = vsel %vm878, %v840, 0
        %v913 = vsel %vm878, %v841, 0
        %v916 = vsel %vm878, %v842, 0
        %v919 = vsel %vm878, %v843, 0
        %v922 = vsel %vm878, %v844, 0
        %v925 = vsel %vm878, %v845, 0
        %v928 = vsel %vm878, %v862, 0
        %v931 = vsel %vm878, %v863, 0
        %v934 = vsel %vm878, %v864, 0
        %v937 = vsel %vm878, %v865, 0
        %v940 = vsel %vm878, %v866, 0
        %v943 = vsel %vm878, %v867, 0
        %v946 = vsel %vm878, %v868, 0
        %v949 = vsel %vm878, %v869, 0
        %v952 = vsel %vm878, %v870, 0
        %v955 = vsel %vm878, %v871, 0
        %v958 = vsel %vm878, %v872, 0
        %v961 = vsel %vm878, %v873, 0
        %v964 = vsel %vm878, %v874, 0
        %v967 = vsel %vm878, %v875, 0
        %v970 = vsel %vm878, %v876, 0
        %v973 = vsel %vm878, %v877, 0
        %975 = vmatprep.subr.mxu0 %v750
        %976 = vmatpush1.msra.mxu0 %v748
        %977 = vmatprep.subr.mxu0 %v756
        %978 = vmatpush1.msra.mxu0 %v754
        %979 = vmatprep.subr.mxu0 0.0
        %980 = vmatpush1.msra.mxu0 0.0
        %981 = vmatprep.subr.mxu0 0.0
        %982 = vmatpush1.msra.mxu0 0.0
        %983 = vmatprep.subr.mxu0 0.0
        %984 = vmatpush1.msra.mxu0 0.0
        %985 = vmatprep.subr.mxu0 0.0
        %986 = vmatpush1.msra.mxu0 0.0
        %987 = vmatprep.subr.mxu0 0.0
        %988 = vmatpush1.msra.mxu0 0.0
        %989 = vmatprep.subr.mxu0 0.0
        %990 = vmatpush1.msra.mxu0 0.0
        %991 = vmatprep.subr.mxu0 0.0
        %992 = vmatpush1.msra.mxu0 0.0
        %993 = vmatprep.subr.mxu0 0.0
        %994 = vmatpush1.msra.mxu0 0.0
        %995 = vmatprep.subr.mxu0 0.0
        %996 = vmatpush1.msra.mxu0 0.0
        %997 = vmatprep.subr.mxu0 0.0
        %998 = vmatpush1.msra.mxu0 0.0
        %999 = vmatprep.subr.mxu0 0.0
        %1000 = vmatpush1.msra.mxu0 0.0
        %1001 = vmatprep.subr.mxu0 0.0
        %1002 = vmatpush1.msra.mxu0 0.0
        %1003 = vmatprep.subr.mxu0 0.0
        %1004 = vmatpush1.msra.mxu0 0.0
        %1005 = vmatprep.subr.mxu0 0.0
        %1006 = vmatpush1.msra.mxu0 0.0
        %1007 = vmatprep.subr.mxu0 0.0
        %1008 = vmatpush1.msra.mxu0 0.0
        %1009 = vmatprep.subr.mxu0 0.0
        %1010 = vmatpush1.msra.mxu0 0.0
        %1011 = vmatprep.subr.mxu0 0.0
        %1012 = vmatpush1.msra.mxu0 0.0
        %1013 = vmatprep.subr.mxu0 0.0
        %1014 = vmatpush1.msra.mxu0 0.0
        %1015 = vmatprep.subr.mxu0 0.0
        %1016 = vmatpush1.msra.mxu0 0.0
        %1017 = vmatprep.subr.mxu0 0.0
        %1018 = vmatpush1.msra.mxu0 0.0
        %1019 = vmatprep.subr.mxu0 0.0
        %1020 = vmatpush1.msra.mxu0 0.0
        %1021 = vmatprep.subr.mxu0 0.0
        %1022 = vmatpush1.msra.mxu0 0.0
        %1023 = vmatprep.subr.mxu0 0.0
        %1024 = vmatpush1.msra.mxu0 0.0
        %1025 = vmatprep.subr.mxu0 0.0
        %1026 = vmatpush1.msra.mxu0 0.0
        %1027 = vmatprep.subr.mxu0 0.0
        %1028 = vmatpush1.msra.mxu0 0.0
        %1029 = vmatprep.subr.mxu0 0.0
        %1030 = vmatpush1.msra.mxu0 0.0
        %1031 = vmatprep.subr.mxu0 0.0
        %1032 = vmatpush1.msra.mxu0 0.0
        %1033 = vmatprep.subr.mxu0 0.0
        %1034 = vmatpush1.msra.mxu0 0.0
        %1035 = vmatprep.subr.mxu0 0.0
        %1036 = vmatpush1.msra.mxu0 0.0
        %1037 = vmatprep.subr.mxu0 0.0
        %1038 = vmatpush1.msra.mxu0 0.0
        %1039 = vmatprep.mubr.f32.mxu0 0.0
        %1040 = vmatmul.mubr.f32.gmra.mrb[0].mxu0 %v880
        %v1041 = vpop.f32.mrb[0].mxu0
        %v1042 = vadd.f32 0.0, %v1041
        %v1043 = vpop.f32.mrb[0].mxu0
        %v1044 = vadd.f32 0.0, %v1043
        %1045 = vmatprep.mubr.f32.mxu0 0.0
        %1046 = vmatmul.mubr.f32.gmra.mrb[0].mxu0 %v883
        %v1047 = vpop.f32.mrb[0].mxu0
        %v1048 = vadd.f32 0.0, %v1047
        %v1049 = vpop.f32.mrb[0].mxu0
        %v1050 = vadd.f32 0.0, %v1049
        %1051 = vmatprep.mubr.f32.mxu0 0.0
        %1052 = vmatmul.mubr.f32.gmra.mrb[0].mxu0 %v886
        %v1053 = vpop.f32.mrb[0].mxu0
        %v1054 = vadd.f32 0.0, %v1053
        %v1055 = vpop.f32.mrb[0].mxu0
        %v1056 = vadd.f32 0.0, %v1055
        %1057 = vmatprep.mubr.f32.mxu0 0.0
        %1058 = vmatmul.mubr.f32.gmra.mrb[0].mxu0 %v889
        %v1059 = vpop.f32.mrb[0].mxu0
        %v1060 = vadd.f32 0.0, %v1059
        %v1061 = vpop.f32.mrb[0].mxu0
        %v1062 = vadd.f32 0.0, %v1061
        %1063 = vmatprep.mubr.f32.mxu0 0.0
        %1064 = vmatmul.mubr.f32.gmra.mrb[0].mxu0 %v892
        %v1065 = vpop.f32.mrb[0].mxu0
        %v1066 = vadd.f32 0.0, %v1065
        %v1067 = vpop.f32.mrb[0].mxu0
        %v1068 = vadd.f32 0.0, %v1067
        %1069 = vmatprep.mubr.f32.mxu0 0.0
        %1070 = vmatmul.mubr.f32.gmra.mrb[0].mxu0 %v895
        %v1071 = vpop.f32.mrb[0].mxu0
        %v1072 = vadd.f32 0.0, %v1071
        %v1073 = vpop.f32.mrb[0].mxu0
        %v1074 = vadd.f32 0.0, %v1073
        %1075 = vmatprep.mubr.f32.mxu0 0.0
        %1076 = vmatmul.mubr.f32.gmra.mrb[0].mxu0 %v898
        %v1077 = vpop.f32.mrb[0].mxu0
        %v1078 = vadd.f32 0.0, %v1077
        %v1079 = vpop.f32.mrb[0].mxu0
        %v1080 = vadd.f32 0.0, %v1079
        %1081 = vmatprep.mubr.f32.mxu0 0.0
        %1082 = vmatmul.mubr.f32.gmra.mrb[0].mxu0 %v901
        %v1083 = vpop.f32.mrb[0].mxu0
        %v1084 = vadd.f32 0.0, %v1083
        %v1085 = vpop.f32.mrb[0].mxu0
        %v1086 = vadd.f32 0.0, %v1085
        %1087 = vmatprep.mubr.f32.mxu0 0.0
        %1088 = vmatmul.mubr.f32.gmra.mrb[0].mxu0 %v904
        %v1089 = vpop.f32.mrb[0].mxu0
        %v1090 = vadd.f32 0.0, %v1089
        %v1091 = vpop.f32.mrb[0].mxu0
        %v1092 = vadd.f32 0.0, %v1091
        %1093 = vmatprep.mubr.f32.mxu0 0.0
        %1094 = vmatmul.mubr.f32.gmra.mrb[0].mxu0 %v907
        %v1095 = vpop.f32.mrb[0].mxu0
        %v1096 = vadd.f32 0.0, %v1095
        %v1097 = vpop.f32.mrb[0].mxu0
        %v1098 = vadd.f32 0.0, %v1097
        %1099 = vmatprep.mubr.f32.mxu0 0.0
        %1100 = vmatmul.mubr.f32.gmra.mrb[0].mxu0 %v910
        %v1101 = vpop.f32.mrb[0].mxu0
        %v1102 = vadd.f32 0.0, %v1101
        %v1103 = vpop.f32.mrb[0].mxu0
        %v1104 = vadd.f32 0.0, %v1103
        %1105 = vmatprep.mubr.f32.mxu0 0.0
        %1106 = vmatmul.mubr.f32.gmra.mrb[0].mxu0 %v913
        %v1107 = vpop.f32.mrb[0].mxu0
        %v1108 = vadd.f32 0.0, %v1107
        %v1109 = vpop.f32.mrb[0].mxu0
        %v1110 = vadd.f32 0.0, %v1109
        %1111 = vmatprep.mubr.f32.mxu0 0.0
        %1112 = vmatmul.mubr.f32.gmra.mrb[0].mxu0 %v916
        %v1113 = vpop.f32.mrb[0].mxu0
        %v1114 = vadd.f32 0.0, %v1113
        %v1115 = vpop.f32.mrb[0].mxu0
        %v1116 = vadd.f32 0.0, %v1115
        %1117 = vmatprep.mubr.f32.mxu0 0.0
        %1118 = vmatmul.mubr.f32.gmra.mrb[0].mxu0 %v919
        %v1119 = vpop.f32.mrb[0].mxu0
        %v1120 = vadd.f32 0.0, %v1119
        %v1121 = vpop.f32.mrb[0].mxu0
        %v1122 = vadd.f32 0.0, %v1121
        %1123 = vmatprep.mubr.f32.mxu0 0.0
        %1124 = vmatmul.mubr.f32.gmra.mrb[0].mxu0 %v922
        %v1125 = vpop.f32.mrb[0].mxu0
        %v1126 = vadd.f32 0.0, %v1125
        %v1127 = vpop.f32.mrb[0].mxu0
        %v1128 = vadd.f32 0.0, %v1127
        %1129 = vmatprep.mubr.f32.mxu0 0.0
        %1130 = vmatmul.mubr.f32.gmra.mrb[0].mxu0 %v925
        %v1131 = vpop.f32.mrb[0].mxu0
        %v1132 = vadd.f32 0.0, %v1131
        %v1133 = vpop.f32.mrb[0].mxu0
        %v1134 = vadd.f32 0.0, %v1133
        %1135 = vmatprep.mubr.f32.mxu0 0.0
        %1136 = vmatmul.mubr.f32.gmra.mrb[0].mxu0 %v928
        %v1137 = vpop.f32.mrb[0].mxu0
        %v1138 = vadd.f32 0.0, %v1137
        %v1139 = vpop.f32.mrb[0].mxu0
        %v1140 = vadd.f32 0.0, %v1139
        %1141 = vmatprep.mubr.f32.mxu0 0.0
        %1142 = vmatmul.mubr.f32.gmra.mrb[0].mxu0 %v931
        %v1143 = vpop.f32.mrb[0].mxu0
        %v1144 = vadd.f32 0.0, %v1143
        %v1145 = vpop.f32.mrb[0].mxu0
        %v1146 = vadd.f32 0.0, %v1145
        %1147 = vmatprep.mubr.f32.mxu0 0.0
        %1148 = vmatmul.mubr.f32.gmra.mrb[0].mxu0 %v934
        %v1149 = vpop.f32.mrb[0].mxu0
        %v1150 = vadd.f32 0.0, %v1149
        %v1151 = vpop.f32.mrb[0].mxu0
        %v1152 = vadd.f32 0.0, %v1151
        %1153 = vmatprep.mubr.f32.mxu0 0.0
        %1154 = vmatmul.mubr.f32.gmra.mrb[0].mxu0 %v937
        %v1155 = vpop.f32.mrb[0].mxu0
        %v1156 = vadd.f32 0.0, %v1155
        %v1157 = vpop.f32.mrb[0].mxu0
        %v1158 = vadd.f32 0.0, %v1157
        %1159 = vmatprep.mubr.f32.mxu0 0.0
        %1160 = vmatmul.mubr.f32.gmra.mrb[0].mxu0 %v940
        %v1161 = vpop.f32.mrb[0].mxu0
        %v1162 = vadd.f32 0.0, %v1161
        %v1163 = vpop.f32.mrb[0].mxu0
        %v1164 = vadd.f32 0.0, %v1163
        %1165 = vmatprep.mubr.f32.mxu0 0.0
        %1166 = vmatmul.mubr.f32.gmra.mrb[0].mxu0 %v943
        %v1167 = vpop.f32.mrb[0].mxu0
        %v1168 = vadd.f32 0.0, %v1167
        %v1169 = vpop.f32.mrb[0].mxu0
        %v1170 = vadd.f32 0.0, %v1169
        %1171 = vmatprep.mubr.f32.mxu0 0.0
        %1172 = vmatmul.mubr.f32.gmra.mrb[0].mxu0 %v946
        %v1173 = vpop.f32.mrb[0].mxu0
        %v1174 = vadd.f32 0.0, %v1173
        %v1175 = vpop.f32.mrb[0].mxu0
        %v1176 = vadd.f32 0.0, %v1175
        %1177 = vmatprep.mubr.f32.mxu0 0.0
        %1178 = vmatmul.mubr.f32.gmra.mrb[0].mxu0 %v949
        %v1179 = vpop.f32.mrb[0].mxu0
        %v1180 = vadd.f32 0.0, %v1179
        %v1181 = vpop.f32.mrb[0].mxu0
        %v1182 = vadd.f32 0.0, %v1181
        %1183 = vmatprep.mubr.f32.mxu0 0.0
        %1184 = vmatmul.mubr.f32.gmra.mrb[0].mxu0 %v952
        %v1185 = vpop.f32.mrb[0].mxu0
        %v1186 = vadd.f32 0.0, %v1185
        %v1187 = vpop.f32.mrb[0].mxu0
        %v1188 = vadd.f32 0.0, %v1187
        %1189 = vmatprep.mubr.f32.mxu0 0.0
        %1190 = vmatmul.mubr.f32.gmra.mrb[0].mxu0 %v955
        %v1191 = vpop.f32.mrb[0].mxu0
        %v1192 = vadd.f32 0.0, %v1191
        %v1193 = vpop.f32.mrb[0].mxu0
        %v1194 = vadd.f32 0.0, %v1193
        %1195 = vmatprep.mubr.f32.mxu0 0.0
        %1196 = vmatmul.mubr.f32.gmra.mrb[0].mxu0 %v958
        %v1197 = vpop.f32.mrb[0].mxu0
        %v1198 = vadd.f32 0.0, %v1197
        %v1199 = vpop.f32.mrb[0].mxu0
        %v1200 = vadd.f32 0.0, %v1199
        %1201 = vmatprep.mubr.f32.mxu0 0.0
        %1202 = vmatmul.mubr.f32.gmra.mrb[0].mxu0 %v961
        %v1203 = vpop.f32.mrb[0].mxu0
        %v1204 = vadd.f32 0.0, %v1203
        %v1205 = vpop.f32.mrb[0].mxu0
        %v1206 = vadd.f32 0.0, %v1205
        %1207 = vmatprep.mubr.f32.mxu0 0.0
        %1208 = vmatmul.mubr.f32.gmra.mrb[0].mxu0 %v964
        %v1209 = vpop.f32.mrb[0].mxu0
        %v1210 = vadd.f32 0.0, %v1209
        %v1211 = vpop.f32.mrb[0].mxu0
        %v1212 = vadd.f32 0.0, %v1211
        %1213 = vmatprep.mubr.f32.mxu0 0.0
        %1214 = vmatmul.mubr.f32.gmra.mrb[0].mxu0 %v967
        %v1215 = vpop.f32.mrb[0].mxu0
        %v1216 = vadd.f32 0.0, %v1215
        %v1217 = vpop.f32.mrb[0].mxu0
        %v1218 = vadd.f32 0.0, %v1217
        %1219 = vmatprep.mubr.f32.mxu0 0.0
        %1220 = vmatmul.mubr.f32.gmra.mrb[0].mxu0 %v970
        %v1221 = vpop.f32.mrb[0].mxu0
        %v1222 = vadd.f32 0.0, %v1221
        %v1223 = vpop.f32.mrb[0].mxu0
        %v1224 = vadd.f32 0.0, %v1223
        %1225 = vmatprep.mubr.f32.mxu0 0.0
        %1226 = vmatmul.mubr.f32.gmra.mrb[0].mxu0 %v973
        %v1227 = vpop.f32.mrb[0].mxu0
        %v1228 = vadd.f32 0.0, %v1227
        %v1229 = vpop.f32.mrb[0].mxu0
        %v1230 = vadd.f32 0.0, %v1229
        %1231 = vdwg.mxu0
        %v1232 = vmax.f32 %v1042, %v1044
        %1233 = vmax.xlane.f32.xlu0 %v1232
        %v1234 = vpop.xlane.xlu0 %1233
        %v1235 = vmax.f32 %v1048, %v1050
        %1236 = vmax.xlane.f32.xlu0 %v1235
        %v1237 = vpop.xlane.xlu0 %1236
        %v1238 = vmax.f32 %v1054, %v1056
        %1239 = vmax.xlane.f32.xlu0 %v1238
        %v1240 = vpop.xlane.xlu0 %1239
        %v1241 = vmax.f32 %v1060, %v1062
        %1242 = vmax.xlane.f32.xlu0 %v1241
        %v1243 = vpop.xlane.xlu0 %1242
        %v1244 = vmax.f32 %v1066, %v1068
        %1245 = vmax.xlane.f32.xlu0 %v1244
        %v1246 = vpop.xlane.xlu0 %1245
        %v1247 = vmax.f32 %v1072, %v1074
        %1248 = vmax.xlane.f32.xlu0 %v1247
        %v1249 = vpop.xlane.xlu0 %1248
        %v1250 = vmax.f32 %v1078, %v1080
        %1251 = vmax.xlane.f32.xlu0 %v1250
        %v1252 = vpop.xlane.xlu0 %1251
        %v1253 = vmax.f32 %v1084, %v1086
        %1254 = vmax.xlane.f32.xlu0 %v1253
        %v1255 = vpop.xlane.xlu0 %1254
        %v1256 = vmax.f32 %v1090, %v1092
        %1257 = vmax.xlane.f32.xlu0 %v1256
        %v1258 = vpop.xlane.xlu0 %1257
        %v1259 = vmax.f32 %v1096, %v1098
        %1260 = vmax.xlane.f32.xlu0 %v1259
        %v1261 = vpop.xlane.xlu0 %1260
        %v1262 = vmax.f32 %v1102, %v1104
        %1263 = vmax.xlane.f32.xlu0 %v1262
        %v1264 = vpop.xlane.xlu0 %1263
        %v1265 = vmax.f32 %v1108, %v1110
        %1266 = vmax.xlane.f32.xlu0 %v1265
        %v1267 = vpop.xlane.xlu0 %1266
        %v1268 = vmax.f32 %v1114, %v1116
        %1269 = vmax.xlane.f32.xlu0 %v1268
        %v1270 = vpop.xlane.xlu0 %1269
        %v1271 = vmax.f32 %v1120, %v1122
        %1272 = vmax.xlane.f32.xlu0 %v1271
        %v1273 = vpop.xlane.xlu0 %1272
        %v1274 = vmax.f32 %v1126, %v1128
        %1275 = vmax.xlane.f32.xlu0 %v1274
        %v1276 = vpop.xlane.xlu0 %1275
        %v1277 = vmax.f32 %v1132, %v1134
        %1278 = vmax.xlane.f32.xlu0 %v1277
        %v1279 = vpop.xlane.xlu0 %1278
        %v1280 = vmax.f32 %v1138, %v1140
        %1281 = vmax.xlane.f32.xlu0 %v1280
        %v1282 = vpop.xlane.xlu0 %1281
        %v1283 = vmax.f32 %v1144, %v1146
        %1284 = vmax.xlane.f32.xlu0 %v1283
        %v1285 = vpop.xlane.xlu0 %1284
        %v1286 = vmax.f32 %v1150, %v1152
        %1287 = vmax.xlane.f32.xlu0 %v1286
        %v1288 = vpop.xlane.xlu0 %1287
        %v1289 = vmax.f32 %v1156, %v1158
        %1290 = vmax.xlane.f32.xlu0 %v1289
        %v1291 = vpop.xlane.xlu0 %1290
        %v1292 = vmax.f32 %v1162, %v1164
        %1293 = vmax.xlane.f32.xlu0 %v1292
        %v1294 = vpop.xlane.xlu0 %1293
        %v1295 = vmax.f32 %v1168, %v1170
        %1296 = vmax.xlane.f32.xlu0 %v1295
        %v1297 = vpop.xlane.xlu0 %1296
        %v1298 = vmax.f32 %v1174, %v1176
        %1299 = vmax.xlane.f32.xlu0 %v1298
        %v1300 = vpop.xlane.xlu0 %1299
        %v1301 = vmax.f32 %v1180, %v1182
        %1302 = vmax.xlane.f32.xlu0 %v1301
        %v1303 = vpop.xlane.xlu0 %1302
        %v1304 = vmax.f32 %v1186, %v1188
        %1305 = vmax.xlane.f32.xlu0 %v1304
        %v1306 = vpop.xlane.xlu0 %1305
        %v1307 = vmax.f32 %v1192, %v1194
        %1308 = vmax.xlane.f32.xlu0 %v1307
        %v1309 = vpop.xlane.xlu0 %1308
        %v1310 = vmax.f32 %v1198, %v1200
        %1311 = vmax.xlane.f32.xlu0 %v1310
        %v1312 = vpop.xlane.xlu0 %1311
        %v1313 = vmax.f32 %v1204, %v1206
        %1314 = vmax.xlane.f32.xlu0 %v1313
        %v1315 = vpop.xlane.xlu0 %1314
        %v1316 = vmax.f32 %v1210, %v1212
        %1317 = vmax.xlane.f32.xlu0 %v1316
        %v1318 = vpop.xlane.xlu0 %1317
        %v1319 = vmax.f32 %v1216, %v1218
        %1320 = vmax.xlane.f32.xlu0 %v1319
        %v1321 = vpop.xlane.xlu0 %1320
        %v1322 = vmax.f32 %v1222, %v1224
        %1323 = vmax.xlane.f32.xlu0 %v1322
        %v1324 = vpop.xlane.xlu0 %1323
        %v1325 = vmax.f32 %v1228, %v1230
        %1326 = vmax.xlane.f32.xlu0 %v1325
        %v1327 = vpop.xlane.xlu0 %1326
        %v1328 = vsub.f32 %v1042, %v1234
        %v1329 = vsub.f32 %v1044, %v1234
        %v1330 = vsub.f32 %v1048, %v1237
        %v1331 = vsub.f32 %v1050, %v1237
        %v1332 = vsub.f32 %v1054, %v1240
        %v1333 = vsub.f32 %v1056, %v1240
        %v1334 = vsub.f32 %v1060, %v1243
        %v1335 = vsub.f32 %v1062, %v1243
        %v1336 = vsub.f32 %v1066, %v1246
        %v1337 = vsub.f32 %v1068, %v1246
        %v1338 = vsub.f32 %v1072, %v1249
        %v1339 = vsub.f32 %v1074, %v1249
        %v1340 = vsub.f32 %v1078, %v1252
        %v1341 = vsub.f32 %v1080, %v1252
        %v1342 = vsub.f32 %v1084, %v1255
        %v1343 = vsub.f32 %v1086, %v1255
        %v1344 = vsub.f32 %v1090, %v1258
        %v1345 = vsub.f32 %v1092, %v1258
        %v1346 = vsub.f32 %v1096, %v1261
        %v1347 = vsub.f32 %v1098, %v1261
        %v1348 = vsub.f32 %v1102, %v1264
        %v1349 = vsub.f32 %v1104, %v1264
        %v1350 = vsub.f32 %v1108, %v1267
        %v1351 = vsub.f32 %v1110, %v1267
        %v1352 = vsub.f32 %v1114, %v1270
        %v1353 = vsub.f32 %v1116, %v1270
        %v1354 = vsub.f32 %v1120, %v1273
        %v1355 = vsub.f32 %v1122, %v1273
        %v1356 = vsub.f32 %v1126, %v1276
        %v1357 = vsub.f32 %v1128, %v1276
        %v1358 = vsub.f32 %v1132, %v1279
        %v1359 = vsub.f32 %v1134, %v1279
        %v1360 = vsub.f32 %v1138, %v1282
        %v1361 = vsub.f32 %v1140, %v1282
        %v1362 = vsub.f32 %v1144, %v1285
        %v1363 = vsub.f32 %v1146, %v1285
        %v1364 = vsub.f32 %v1150, %v1288
        %v1365 = vsub.f32 %v1152, %v1288
        %v1366 = vsub.f32 %v1156, %v1291
        %v1367 = vsub.f32 %v1158, %v1291
        %v1368 = vsub.f32 %v1162, %v1294
        %v1369 = vsub.f32 %v1164, %v1294
        %v1370 = vsub.f32 %v1168, %v1297
        %v1371 = vsub.f32 %v1170, %v1297
        %v1372 = vsub.f32 %v1174, %v1300
        %v1373 = vsub.f32 %v1176, %v1300
        %v1374 = vsub.f32 %v1180, %v1303
        %v1375 = vsub.f32 %v1182, %v1303
        %v1376 = vsub.f32 %v1186, %v1306
        %v1377 = vsub.f32 %v1188, %v1306
        %v1378 = vsub.f32 %v1192, %v1309
        %v1379 = vsub.f32 %v1194, %v1309
        %v1380 = vsub.f32 %v1198, %v1312
        %v1381 = vsub.f32 %v1200, %v1312
        %v1382 = vsub.f32 %v1204, %v1315
        %v1383 = vsub.f32 %v1206, %v1315
        %v1384 = vsub.f32 %v1210, %v1318
        %v1385 = vsub.f32 %v1212, %v1318
        %v1386 = vsub.f32 %v1216, %v1321
        %v1387 = vsub.f32 %v1218, %v1321
        %v1388 = vsub.f32 %v1222, %v1324
        %v1389 = vsub.f32 %v1224, %v1324
        %v1390 = vsub.f32 %v1228, %v1327
        %v1391 = vsub.f32 %v1230, %v1327
        %v1392 = vmul.f32 %v1328, 1.442695
        %v1393 = vpow.pop %v1392
        %v1394 = vmul.f32 %v1329, 1.442695
        %v1395 = vpow.pop %v1394
        %v1396 = vmul.f32 %v1330, 1.442695
        %v1397 = vpow.pop %v1396
        %v1398 = vmul.f32 %v1331, 1.442695
        %v1399 = vpow.pop %v1398
        %v1400 = vmul.f32 %v1332, 1.442695
        %v1401 = vpow.pop %v1400
        %v1402 = vmul.f32 %v1333, 1.442695
        %v1403 = vpow.pop %v1402
        %v1404 = vmul.f32 %v1334, 1.442695
        %v1405 = vpow.pop %v1404
        %v1406 = vmul.f32 %v1335, 1.442695
        %v1407 = vpow.pop %v1406
        %v1408 = vmul.f32 %v1336, 1.442695
        %v1409 = vpow.pop %v1408
        %v1410 = vmul.f32 %v1337, 1.442695
        %v1411 = vpow.pop %v1410
        %v1412 = vmul.f32 %v1338, 1.442695
        %v1413 = vpow.pop %v1412
        %v1414 = vmul.f32 %v1339, 1.442695
        %v1415 = vpow.pop %v1414
        %v1416 = vmul.f32 %v1340, 1.442695
        %v1417 = vpow.pop %v1416
        %v1418 = vmul.f32 %v1341, 1.442695
        %v1419 = vpow.pop %v1418
        %v1420 = vmul.f32 %v1342, 1.442695
        %v1421 = vpow.pop %v1420
        %v1422 = vmul.f32 %v1343, 1.442695
        %v1423 = vpow.pop %v1422
        %v1424 = vmul.f32 %v1344, 1.442695
        %v1425 = vpow.pop %v1424
        %v1426 = vmul.f32 %v1345, 1.442695
        %v1427 = vpow.pop %v1426
        %v1428 = vmul.f32 %v1346, 1.442695
        %v1429 = vpow.pop %v1428
        %v1430 = vmul.f32 %v1347, 1.442695
        %v1431 = vpow.pop %v1430
        %v1432 = vmul.f32 %v1348, 1.442695
        %v1433 = vpow.pop %v1432
        %v1434 = vmul.f32 %v1349, 1.442695
        %v1435 = vpow.pop %v1434
        %v1436 = vmul.f32 %v1350, 1.442695
        %v1437 = vpow.pop %v1436
        %v1438 = vmul.f32 %v1351, 1.442695
        %v1439 = vpow.pop %v1438
        %v1440 = vmul.f32 %v1352, 1.442695
        %v1441 = vpow.pop %v1440
        %v1442 = vmul.f32 %v1353, 1.442695
        %v1443 = vpow.pop %v1442
        %v1444 = vmul.f32 %v1354, 1.442695
        %v1445 = vpow.pop %v1444
        %v1446 = vmul.f32 %v1355, 1.442695
        %v1447 = vpow.pop %v1446
        %v1448 = vmul.f32 %v1356, 1.442695
        %v1449 = vpow.pop %v1448
        %v1450 = vmul.f32 %v1357, 1.442695
        %v1451 = vpow.pop %v1450
        %v1452 = vmul.f32 %v1358, 1.442695
        %v1453 = vpow.pop %v1452
        %v1454 = vmul.f32 %v1359, 1.442695
        %v1455 = vpow.pop %v1454
        %v1456 = vmul.f32 %v1360, 1.442695
        %v1457 = vpow.pop %v1456
        %v1458 = vmul.f32 %v1361, 1.442695
        %v1459 = vpow.pop %v1458
        %v1460 = vmul.f32 %v1362, 1.442695
        %v1461 = vpow.pop %v1460
        %v1462 = vmul.f32 %v1363, 1.442695
        %v1463 = vpow.pop %v1462
        %v1464 = vmul.f32 %v1364, 1.442695
        %v1465 = vpow.pop %v1464
        %v1466 = vmul.f32 %v1365, 1.442695
        %v1467 = vpow.pop %v1466
        %v1468 = vmul.f32 %v1366, 1.442695
        %v1469 = vpow.pop %v1468
        %v1470 = vmul.f32 %v1367, 1.442695
        %v1471 = vpow.pop %v1470
        %v1472 = vmul.f32 %v1368, 1.442695
        %v1473 = vpow.pop %v1472
        %v1474 = vmul.f32 %v1369, 1.442695
        %v1475 = vpow.pop %v1474
        %v1476 = vmul.f32 %v1370, 1.442695
        %v1477 = vpow.pop %v1476
        %v1478 = vmul.f32 %v1371, 1.442695
        %v1479 = vpow.pop %v1478
        %v1480 = vmul.f32 %v1372, 1.442695
        %v1481 = vpow.pop %v1480
        %v1482 = vmul.f32 %v1373, 1.442695
        %v1483 = vpow.pop %v1482
        %v1484 = vmul.f32 %v1374, 1.442695
        %v1485 = vpow.pop %v1484
        %v1486 = vmul.f32 %v1375, 1.442695
        %v1487 = vpow.pop %v1486
        %v1488 = vmul.f32 %v1376, 1.442695
        %v1489 = vpow.pop %v1488
        %v1490 = vmul.f32 %v1377, 1.442695
        %v1491 = vpow.pop %v1490
        %v1492 = vmul.f32 %v1378, 1.442695
        %v1493 = vpow.pop %v1492
        %v1494 = vmul.f32 %v1379, 1.442695
        %v1495 = vpow.pop %v1494
        %v1496 = vmul.f32 %v1380, 1.442695
        %v1497 = vpow.pop %v1496
        %v1498 = vmul.f32 %v1381, 1.442695
        %v1499 = vpow.pop %v1498
        %v1500 = vmul.f32 %v1382, 1.442695
        %v1501 = vpow.pop %v1500
        %v1502 = vmul.f32 %v1383, 1.442695
        %v1503 = vpow.pop %v1502
        %v1504 = vmul.f32 %v1384, 1.442695
        %v1505 = vpow.pop %v1504
        %v1506 = vmul.f32 %v1385, 1.442695
        %v1507 = vpow.pop %v1506
        %v1508 = vmul.f32 %v1386, 1.442695
        %v1509 = vpow.pop %v1508
        %v1510 = vmul.f32 %v1387, 1.442695
        %v1511 = vpow.pop %v1510
        %v1512 = vmul.f32 %v1388, 1.442695
        %v1513 = vpow.pop %v1512
        %v1514 = vmul.f32 %v1389, 1.442695
        %v1515 = vpow.pop %v1514
        %v1516 = vmul.f32 %v1390, 1.442695
        %v1517 = vpow.pop %v1516
        %v1518 = vmul.f32 %v1391, 1.442695
        %v1519 = vpow.pop %v1518
        %v1520 = vadd.f32 %v1393, %v1395
        %1521 = vadd.xlane.f32.xlu0 %v1520
        %v1522 = vpop.xlane.xlu0 %1521
        %v1523 = vadd.f32 %v1397, %v1399
        %1524 = vadd.xlane.f32.xlu0 %v1523
        %v1525 = vpop.xlane.xlu0 %1524
        %v1526 = vadd.f32 %v1401, %v1403
        %1527 = vadd.xlane.f32.xlu0 %v1526
        %v1528 = vpop.xlane.xlu0 %1527
        %v1529 = vadd.f32 %v1405, %v1407
        %1530 = vadd.xlane.f32.xlu0 %v1529
        %v1531 = vpop.xlane.xlu0 %1530
        %v1532 = vadd.f32 %v1409, %v1411
        %1533 = vadd.xlane.f32.xlu0 %v1532
        %v1534 = vpop.xlane.xlu0 %1533
        %v1535 = vadd.f32 %v1413, %v1415
        %1536 = vadd.xlane.f32.xlu0 %v1535
        %v1537 = vpop.xlane.xlu0 %1536
        %v1538 = vadd.f32 %v1417, %v1419
        %1539 = vadd.xlane.f32.xlu0 %v1538
        %v1540 = vpop.xlane.xlu0 %1539
        %v1541 = vadd.f32 %v1421, %v1423
        %1542 = vadd.xlane.f32.xlu0 %v1541
        %v1543 = vpop.xlane.xlu0 %1542
        %v1544 = vadd.f32 %v1425, %v1427
        %1545 = vadd.xlane.f32.xlu0 %v1544
        %v1546 = vpop.xlane.xlu0 %1545
        %v1547 = vadd.f32 %v1429, %v1431
        %1548 = vadd.xlane.f32.xlu0 %v1547
        %v1549 = vpop.xlane.xlu0 %1548
        %v1550 = vadd.f32 %v1433, %v1435
        %1551 = vadd.xlane.f32.xlu0 %v1550
        %v1552 = vpop.xlane.xlu0 %1551
        %v1553 = vadd.f32 %v1437, %v1439
        %1554 = vadd.xlane.f32.xlu0 %v1553
        %v1555 = vpop.xlane.xlu0 %1554
        %v1556 = vadd.f32 %v1441, %v1443
        %1557 = vadd.xlane.f32.xlu0 %v1556
        %v1558 = vpop.xlane.xlu0 %1557
        %v1559 = vadd.f32 %v1445, %v1447
        %1560 = vadd.xlane.f32.xlu0 %v1559
        %v1561 = vpop.xlane.xlu0 %1560
        %v1562 = vadd.f32 %v1449, %v1451
        %1563 = vadd.xlane.f32.xlu0 %v1562
        %v1564 = vpop.xlane.xlu0 %1563
        %v1565 = vadd.f32 %v1453, %v1455
        %1566 = vadd.xlane.f32.xlu0 %v1565
        %v1567 = vpop.xlane.xlu0 %1566
        %v1568 = vadd.f32 %v1457, %v1459
        %1569 = vadd.xlane.f32.xlu0 %v1568
        %v1570 = vpop.xlane.xlu0 %1569
        %v1571 = vadd.f32 %v1461, %v1463
        %1572 = vadd.xlane.f32.xlu0 %v1571
        %v1573 = vpop.xlane.xlu0 %1572
        %v1574 = vadd.f32 %v1465, %v1467
        %1575 = vadd.xlane.f32.xlu0 %v1574
        %v1576 = vpop.xlane.xlu0 %1575
        %v1577 = vadd.f32 %v1469, %v1471
        %1578 = vadd.xlane.f32.xlu0 %v1577
        %v1579 = vpop.xlane.xlu0 %1578
        %v1580 = vadd.f32 %v1473, %v1475
        %1581 = vadd.xlane.f32.xlu0 %v1580
        %v1582 = vpop.xlane.xlu0 %1581
        %v1583 = vadd.f32 %v1477, %v1479
        %1584 = vadd.xlane.f32.xlu0 %v1583
        %v1585 = vpop.xlane.xlu0 %1584
        %v1586 = vadd.f32 %v1481, %v1483
        %1587 = vadd.xlane.f32.xlu0 %v1586
        %v1588 = vpop.xlane.xlu0 %1587
        %v1589 = vadd.f32 %v1485, %v1487
        %1590 = vadd.xlane.f32.xlu0 %v1589
        %v1591 = vpop.xlane.xlu0 %1590
        %v1592 = vadd.f32 %v1489, %v1491
        %1593 = vadd.xlane.f32.xlu0 %v1592
        %v1594 = vpop.xlane.xlu0 %1593
        %v1595 = vadd.f32 %v1493, %v1495
        %1596 = vadd.xlane.f32.xlu0 %v1595
        %v1597 = vpop.xlane.xlu0 %1596
        %v1598 = vadd.f32 %v1497, %v1499
        %1599 = vadd.xlane.f32.xlu0 %v1598
        %v1600 = vpop.xlane.xlu0 %1599
        %v1601 = vadd.f32 %v1501, %v1503
        %1602 = vadd.xlane.f32.xlu0 %v1601
        %v1603 = vpop.xlane.xlu0 %1602
        %v1604 = vadd.f32 %v1505, %v1507
        %1605 = vadd.xlane.f32.xlu0 %v1604
        %v1606 = vpop.xlane.xlu0 %1605
        %v1607 = vadd.f32 %v1509, %v1511
        %1608 = vadd.xlane.f32.xlu0 %v1607
        %v1609 = vpop.xlane.xlu0 %1608
        %v1610 = vadd.f32 %v1513, %v1515
        %1611 = vadd.xlane.f32.xlu0 %v1610
        %v1612 = vpop.xlane.xlu0 %1611
        %v1613 = vadd.f32 %v1517, %v1519
        %1614 = vadd.xlane.f32.xlu0 %v1613
        %v1615 = vpop.xlane.xlu0 %1614
        %v1616 = vrcp.pop %v1522
        %v1617 = vrcp.pop %v1525
        %v1618 = vrcp.pop %v1528
        %v1619 = vrcp.pop %v1531
        %v1620 = vrcp.pop %v1534
        %v1621 = vrcp.pop %v1537
        %v1622 = vrcp.pop %v1540
        %v1623 = vrcp.pop %v1543
        %v1624 = vrcp.pop %v1546
        %v1625 = vrcp.pop %v1549
        %v1626 = vrcp.pop %v1552
        %v1627 = vrcp.pop %v1555
        %v1628 = vrcp.pop %v1558
        %v1629 = vrcp.pop %v1561
        %v1630 = vrcp.pop %v1564
        %v1631 = vrcp.pop %v1567
        %v1632 = vrcp.pop %v1570
        %v1633 = vrcp.pop %v1573
        %v1634 = vrcp.pop %v1576
        %v1635 = vrcp.pop %v1579
        %v1636 = vrcp.pop %v1582
        %v1637 = vrcp.pop %v1585
        %v1638 = vrcp.pop %v1588
        %v1639 = vrcp.pop %v1591
        %v1640 = vrcp.pop %v1594
        %v1641 = vrcp.pop %v1597
        %v1642 = vrcp.pop %v1600
        %v1643 = vrcp.pop %v1603
        %v1644 = vrcp.pop %v1606
        %v1645 = vrcp.pop %v1609
        %v1646 = vrcp.pop %v1612
        %v1647 = vrcp.pop %v1615
        %v1648 = vmul.f32 %v1393, %v1616
        %v1649 = vmul.f32 %v1395, %v1616
        %v1650 = vmul.f32 %v1397, %v1617
        %v1651 = vmul.f32 %v1399, %v1617
        %v1652 = vmul.f32 %v1401, %v1618
        %v1653 = vmul.f32 %v1403, %v1618
        %v1654 = vmul.f32 %v1405, %v1619
        %v1655 = vmul.f32 %v1407, %v1619
        %v1656 = vmul.f32 %v1409, %v1620
        %v1657 = vmul.f32 %v1411, %v1620
        %v1658 = vmul.f32 %v1413, %v1621
        %v1659 = vmul.f32 %v1415, %v1621
        %v1660 = vmul.f32 %v1417, %v1622
        %v1661 = vmul.f32 %v1419, %v1622
        %v1662 = vmul.f32 %v1421, %v1623
        %v1663 = vmul.f32 %v1423, %v1623
        %v1664 = vmul.f32 %v1425, %v1624
        %v1665 = vmul.f32 %v1427, %v1624
        %v1666 = vmul.f32 %v1429, %v1625
        %v1667 = vmul.f32 %v1431, %v1625
        %v1668 = vmul.f32 %v1433, %v1626
        %v1669 = vmul.f32 %v1435, %v1626
        %v1670 = vmul.f32 %v1437, %v1627
        %v1671 = vmul.f32 %v1439, %v1627
        %v1672 = vmul.f32 %v1441, %v1628
        %v1673 = vmul.f32 %v1443, %v1628
        %v1674 = vmul.f32 %v1445, %v1629
        %v1675 = vmul.f32 %v1447, %v1629
        %v1676 = vmul.f32 %v1449, %v1630
        %v1677 = vmul.f32 %v1451, %v1630
        %v1678 = vmul.f32 %v1453, %v1631
        %v1679 = vmul.f32 %v1455, %v1631
        %v1680 = vmul.f32 %v1457, %v1632
        %v1681 = vmul.f32 %v1459, %v1632
        %v1682 = vmul.f32 %v1461, %v1633
        %v1683 = vmul.f32 %v1463, %v1633
        %v1684 = vmul.f32 %v1465, %v1634
        %v1685 = vmul.f32 %v1467, %v1634
        %v1686 = vmul.f32 %v1469, %v1635
        %v1687 = vmul.f32 %v1471, %v1635
        %v1688 = vmul.f32 %v1473, %v1636
        %v1689 = vmul.f32 %v1475, %v1636
        %v1690 = vmul.f32 %v1477, %v1637
        %v1691 = vmul.f32 %v1479, %v1637
        %v1692 = vmul.f32 %v1481, %v1638
        %v1693 = vmul.f32 %v1483, %v1638
        %v1694 = vmul.f32 %v1485, %v1639
        %v1695 = vmul.f32 %v1487, %v1639
        %v1696 = vmul.f32 %v1489, %v1640
        %v1697 = vmul.f32 %v1491, %v1640
        %v1698 = vmul.f32 %v1493, %v1641
        %v1699 = vmul.f32 %v1495, %v1641
        %v1700 = vmul.f32 %v1497, %v1642
        %v1701 = vmul.f32 %v1499, %v1642
        %v1702 = vmul.f32 %v1501, %v1643
        %v1703 = vmul.f32 %v1503, %v1643
        %v1704 = vmul.f32 %v1505, %v1644
        %v1705 = vmul.f32 %v1507, %v1644
        %v1706 = vmul.f32 %v1509, %v1645
        %v1707 = vmul.f32 %v1511, %v1645
        %v1708 = vmul.f32 %v1513, %v1646
        %v1709 = vmul.f32 %v1515, %v1646
        %v1710 = vmul.f32 %v1517, %v1647
        %v1711 = vmul.f32 %v1519, %v1647
        %1712 = vmatprep.subr.mxu0 %v1649
        %1713 = vmatpush1.xpose.msra.mxu0 %v1648
        %1714 = vmatprep.subr.mxu0 %v1651
        %1715 = vmatpush1.xpose.msra.mxu0 %v1650
        %1716 = vmatprep.subr.mxu0 %v1653
        %1717 = vmatpush1.xpose.msra.mxu0 %v1652
        %1718 = vmatprep.subr.mxu0 %v1655
        %1719 = vmatpush1.xpose.msra.mxu0 %v1654
        %1720 = vmatprep.subr.mxu0 %v1657
        %1721 = vmatpush1.xpose.msra.mxu0 %v1656
        %1722 = vmatprep.subr.mxu0 %v1659
        %1723 = vmatpush1.xpose.msra.mxu0 %v1658
        %1724 = vmatprep.subr.mxu0 %v1661
        %1725 = vmatpush1.xpose.msra.mxu0 %v1660
        %1726 = vmatprep.subr.mxu0 %v1663
        %1727 = vmatpush1.xpose.msra.mxu0 %v1662
        %1728 = vmatprep.subr.mxu0 %v1665
        %1729 = vmatpush1.xpose.msra.mxu0 %v1664
        %1730 = vmatprep.subr.mxu0 %v1667
        %1731 = vmatpush1.xpose.msra.mxu0 %v1666
        %1732 = vmatprep.subr.mxu0 %v1669
        %1733 = vmatpush1.xpose.msra.mxu0 %v1668
        %1734 = vmatprep.subr.mxu0 %v1671
        %1735 = vmatpush1.xpose.msra.mxu0 %v1670
        %1736 = vmatprep.subr.mxu0 %v1673
        %1737 = vmatpush1.xpose.msra.mxu0 %v1672
        %1738 = vmatprep.subr.mxu0 %v1675
        %1739 = vmatpush1.xpose.msra.mxu0 %v1674
        %1740 = vmatprep.subr.mxu0 %v1677
        %1741 = vmatpush1.xpose.msra.mxu0 %v1676
        %1742 = vmatprep.subr.mxu0 %v1679
        %1743 = vmatpush1.xpose.msra.mxu0 %v1678
        %1744 = vmatprep.subr.mxu0 %v1681
        %1745 = vmatpush1.xpose.msra.mxu0 %v1680
        %1746 = vmatprep.subr.mxu0 %v1683
        %1747 = vmatpush1.xpose.msra.mxu0 %v1682
        %1748 = vmatprep.subr.mxu0 %v1685
        %1749 = vmatpush1.xpose.msra.mxu0 %v1684
        %1750 = vmatprep.subr.mxu0 %v1687
        %1751 = vmatpush1.xpose.msra.mxu0 %v1686
        %1752 = vmatprep.subr.mxu0 %v1689
        %1753 = vmatpush1.xpose.msra.mxu0 %v1688
        %1754 = vmatprep.subr.mxu0 %v1691
        %1755 = vmatpush1.xpose.msra.mxu0 %v1690
        %1756 = vmatprep.subr.mxu0 %v1693
        %1757 = vmatpush1.xpose.msra.mxu0 %v1692
        %1758 = vmatprep.subr.mxu0 %v1695
        %1759 = vmatpush1.xpose.msra.mxu0 %v1694
        %1760 = vmatprep.subr.mxu0 %v1697
        %1761 = vmatpush1.xpose.msra.mxu0 %v1696
        %1762 = vmatprep.subr.mxu0 %v1699
        %1763 = vmatpush1.xpose.msra.mxu0 %v1698
        %1764 = vmatprep.subr.mxu0 %v1701
        %1765 = vmatpush1.xpose.msra.mxu0 %v1700
        %1766 = vmatprep.subr.mxu0 %v1703
        %1767 = vmatpush1.xpose.msra.mxu0 %v1702
        %1768 = vmatprep.subr.mxu0 %v1705
        %1769 = vmatpush1.xpose.msra.mxu0 %v1704
        %1770 = vmatprep.subr.mxu0 %v1707
        %1771 = vmatpush1.xpose.msra.mxu0 %v1706
        %1772 = vmatprep.subr.mxu0 %v1709
        %1773 = vmatpush1.xpose.msra.mxu0 %v1708
        %1774 = vmatprep.subr.mxu0 %v1711
        %1775 = vmatpush1.xpose.msra.mxu0 %v1710
        %1776 = vmatprep.mubr.f32.mxu0 %v762
        %1777 = vmatmul.mubr.f32.gmra.mrb[0].mxu0 %v760
        %v1778 = vpop.f32.mrb[0].mxu0
        %v1779 = vadd.f32 0.0, %v1778
        %v1780 = vpop.f32.mrb[0].mxu0
        %v1781 = vadd.f32 0.0, %v1780
        %1782 = vmatprep.mubr.f32.mxu0 %v768
        %1783 = vmatmul.mubr.f32.gmra.mrb[0].mxu0 %v766
        %v1784 = vpop.f32.mrb[0].mxu0
        %v1785 = vadd.f32 0.0, %v1784
        %v1786 = vpop.f32.mrb[0].mxu0
        %v1787 = vadd.f32 0.0, %v1786
        %1788 = vdwg.mxu0
        %v1789 = vmul.f32 %v772, 0.17677669
        %v1790 = vmul.f32 %v774, 0.17677669
        %v1791 = vmul.f32 %v778, 0.17677669
        %v1792 = vmul.f32 %v780, 0.17677669
        %1793 = vxpose.xlu0.b32.start [1/16] %v1789, 128
        %1794 = vxpose.xlu0.b32.cont [2/16] %v1791, 128
        %1795 = vxpose.xlu0.b32.cont [3/16] 0.0, 128
        %1796 = vxpose.xlu0.b32.cont [4/16] 0.0, 128
        %1797 = vxpose.xlu0.b32.cont [5/16] 0.0, 128
        %1798 = vxpose.xlu0.b32.cont [6/16] 0.0, 128
        %1799 = vxpose.xlu0.b32.cont [7/16] 0.0, 128
        %1800 = vxpose.xlu0.b32.cont [8/16] 0.0, 128
        %1801 = vxpose.xlu0.b32.cont [9/16] 0.0, 128
        %1802 = vxpose.xlu0.b32.cont [10/16] 0.0, 128
        %1803 = vxpose.xlu0.b32.cont [11/16] 0.0, 128
        %1804 = vxpose.xlu0.b32.cont [12/16] 0.0, 128
        %1805 = vxpose.xlu0.b32.cont [13/16] 0.0, 128
        %1806 = vxpose.xlu0.b32.cont [14/16] 0.0, 128
        %1807 = vxpose.xlu0.b32.cont [15/16] 0.0, 128
        %1808 = vxpose.xlu0.b32.end [16/16] 0.0, 128
        %v1809 = vpop.trf.xlu0
        %v1810 = vpop.trf.xlu0
        %v1811 = vpop.trf.xlu0
        %v1812 = vpop.trf.xlu0
        %v1813 = vpop.trf.xlu0
        %v1814 = vpop.trf.xlu0
        %v1815 = vpop.trf.xlu0
        %v1816 = vpop.trf.xlu0
        %v1817 = vpop.trf.xlu0
        %v1818 = vpop.trf.xlu0
        %v1819 = vpop.trf.xlu0
        %v1820 = vpop.trf.xlu0
        %v1821 = vpop.trf.xlu0
        %v1822 = vpop.trf.xlu0
        %v1823 = vpop.trf.xlu0
        %v1824 = vpop.trf.xlu0
        %1825 = vxpose.xlu0.b32.start [1/16] %v1790, 128
        %1826 = vxpose.xlu0.b32.cont [2/16] %v1792, 128
        %1827 = vxpose.xlu0.b32.cont [3/16] 0.0, 128
        %1828 = vxpose.xlu0.b32.cont [4/16] 0.0, 128
        %1829 = vxpose.xlu0.b32.cont [5/16] 0.0, 128
        %1830 = vxpose.xlu0.b32.cont [6/16] 0.0, 128
        %1831 = vxpose.xlu0.b32.cont [7/16] 0.0, 128
        %1832 = vxpose.xlu0.b32.cont [8/16] 0.0, 128
        %1833 = vxpose.xlu0.b32.cont [9/16] 0.0, 128
        %1834 = vxpose.xlu0.b32.cont [10/16] 0.0, 128
        %1835 = vxpose.xlu0.b32.cont [11/16] 0.0, 128
        %1836 = vxpose.xlu0.b32.cont [12/16] 0.0, 128
        %1837 = vxpose.xlu0.b32.cont [13/16] 0.0, 128
        %1838 = vxpose.xlu0.b32.cont [14/16] 0.0, 128
        %1839 = vxpose.xlu0.b32.cont [15/16] 0.0, 128
        %1840 = vxpose.xlu0.b32.end [16/16] 0.0, 128
        %v1841 = vpop.trf.xlu0
        %v1842 = vpop.trf.xlu0
        %v1843 = vpop.trf.xlu0
        %v1844 = vpop.trf.xlu0
        %v1845 = vpop.trf.xlu0
        %v1846 = vpop.trf.xlu0
        %v1847 = vpop.trf.xlu0
        %v1848 = vpop.trf.xlu0
        %v1849 = vpop.trf.xlu0
        %v1850 = vpop.trf.xlu0
        %v1851 = vpop.trf.xlu0
        %v1852 = vpop.trf.xlu0
        %v1853 = vpop.trf.xlu0
        %v1854 = vpop.trf.xlu0
        %v1855 = vpop.trf.xlu0
        %v1856 = vpop.trf.xlu0
        %v1858 = vsel %vm878, %v1809, 0
        %v1861 = vsel %vm878, %v1810, 0
        %v1864 = vsel %vm878, %v1811, 0
        %v1867 = vsel %vm878, %v1812, 0
        %v1870 = vsel %vm878, %v1813, 0
        %v1873 = vsel %vm878, %v1814, 0
        %v1876 = vsel %vm878, %v1815, 0
        %v1879 = vsel %vm878, %v1816, 0
        %v1882 = vsel %vm878, %v1817, 0
        %v1885 = vsel %vm878, %v1818, 0
        %v1888 = vsel %vm878, %v1819, 0
        %v1891 = vsel %vm878, %v1820, 0
        %v1894 = vsel %vm878, %v1821, 0
        %v1897 = vsel %vm878, %v1822, 0
        %v1900 = vsel %vm878, %v1823, 0
        %v1903 = vsel %vm878, %v1824, 0
        %v1906 = vsel %vm878, %v1841, 0
        %v1909 = vsel %vm878, %v1842, 0
        %v1912 = vsel %vm878, %v1843, 0
        %v1915 = vsel %vm878, %v1844, 0
        %v1918 = vsel %vm878, %v1845, 0
        %v1921 = vsel %vm878, %v1846, 0
        %v1924 = vsel %vm878, %v1847, 0
        %v1927 = vsel %vm878, %v1848, 0
        %v1930 = vsel %vm878, %v1849, 0
        %v1933 = vsel %vm878, %v1850, 0
        %v1936 = vsel %vm878, %v1851, 0
        %v1939 = vsel %vm878, %v1852, 0
        %v1942 = vsel %vm878, %v1853, 0
        %v1945 = vsel %vm878, %v1854, 0
        %v1948 = vsel %vm878, %v1855, 0
        %v1951 = vsel %vm878, %v1856, 0
        %1953 = vmatprep.subr.mxu0 %v786
        %1954 = vmatpush1.msra.mxu0 %v784
        %1955 = vmatprep.subr.mxu0 %v792
        %1956 = vmatpush1.msra.mxu0 %v790
        %1957 = vmatprep.subr.mxu0 0.0
        %1958 = vmatpush1.msra.mxu0 0.0
        %1959 = vmatprep.subr.mxu0 0.0
        %1960 = vmatpush1.msra.mxu0 0.0
        %1961 = vmatprep.subr.mxu0 0.0
        %1962 = vmatpush1.msra.mxu0 0.0
        %1963 = vmatprep.subr.mxu0 0.0
        %1964 = vmatpush1.msra.mxu0 0.0
        %1965 = vmatprep.subr.mxu0 0.0
        %1966 = vmatpush1.msra.mxu0 0.0
        %1967 = vmatprep.subr.mxu0 0.0
        %1968 = vmatpush1.msra.mxu0 0.0
        %1969 = vmatprep.subr.mxu0 0.0
        %1970 = vmatpush1.msra.mxu0 0.0
        %1971 = vmatprep.subr.mxu0 0.0
        %1972 = vmatpush1.msra.mxu0 0.0
        %1973 = vmatprep.subr.mxu0 0.0
        %1974 = vmatpush1.msra.mxu0 0.0
        %1975 = vmatprep.subr.mxu0 0.0
        %1976 = vmatpush1.msra.mxu0 0.0
        %1977 = vmatprep.subr.mxu0 0.0
        %1978 = vmatpush1.msra.mxu0 0.0
        %1979 = vmatprep.subr.mxu0 0.0
        %1980 = vmatpush1.msra.mxu0 0.0
        %1981 = vmatprep.subr.mxu0 0.0
        %1982 = vmatpush1.msra.mxu0 0.0
        %1983 = vmatprep.subr.mxu0 0.0
        %1984 = vmatpush1.msra.mxu0 0.0
        %1985 = vmatprep.subr.mxu0 0.0
        %1986 = vmatpush1.msra.mxu0 0.0
        %1987 = vmatprep.subr.mxu0 0.0
        %1988 = vmatpush1.msra.mxu0 0.0
        %1989 = vmatprep.subr.mxu0 0.0
        %1990 = vmatpush1.msra.mxu0 0.0
        %1991 = vmatprep.subr.mxu0 0.0
        %1992 = vmatpush1.msra.mxu0 0.0
        %1993 = vmatprep.subr.mxu0 0.0
        %1994 = vmatpush1.msra.mxu0 0.0
        %1995 = vmatprep.subr.mxu0 0.0
        %1996 = vmatpush1.msra.mxu0 0.0
        %1997 = vmatprep.subr.mxu0 0.0
        %1998 = vmatpush1.msra.mxu0 0.0
        %1999 = vmatprep.subr.mxu0 0.0
        %2000 = vmatpush1.msra.mxu0 0.0
        %2001 = vmatprep.subr.mxu0 0.0
        %2002 = vmatpush1.msra.mxu0 0.0
        %2003 = vmatprep.subr.mxu0 0.0
        %2004 = vmatpush1.msra.mxu0 0.0
        %2005 = vmatprep.subr.mxu0 0.0
        %2006 = vmatpush1.msra.mxu0 0.0
        %2007 = vmatprep.subr.mxu0 0.0
        %2008 = vmatpush1.msra.mxu0 0.0
        %2009 = vmatprep.subr.mxu0 0.0
        %2010 = vmatpush1.msra.mxu0 0.0
        %2011 = vmatprep.subr.mxu0 0.0
        %2012 = vmatpush1.msra.mxu0 0.0
        %2013 = vmatprep.subr.mxu0 0.0
        %2014 = vmatpush1.msra.mxu0 0.0
        %2015 = vmatprep.subr.mxu0 0.0
        %2016 = vmatpush1.msra.mxu0 0.0
        %2017 = vmatprep.mubr.f32.mxu0 0.0
        %2018 = vmatmul.mubr.f32.gmra.mrb[0].mxu0 %v1858
        %v2019 = vpop.f32.mrb[0].mxu0
        %v2020 = vadd.f32 0.0, %v2019
        %v2021 = vpop.f32.mrb[0].mxu0
        %v2022 = vadd.f32 0.0, %v2021
        %2023 = vmatprep.mubr.f32.mxu0 0.0
        %2024 = vmatmul.mubr.f32.gmra.mrb[0].mxu0 %v1861
        %v2025 = vpop.f32.mrb[0].mxu0
        %v2026 = vadd.f32 0.0, %v2025
        %v2027 = vpop.f32.mrb[0].mxu0
        %v2028 = vadd.f32 0.0, %v2027
        %2029 = vmatprep.mubr.f32.mxu0 0.0
        %2030 = vmatmul.mubr.f32.gmra.mrb[0].mxu0 %v1864
        %v2031 = vpop.f32.mrb[0].mxu0
        %v2032 = vadd.f32 0.0, %v2031
        %v2033 = vpop.f32.mrb[0].mxu0
        %v2034 = vadd.f32 0.0, %v2033
        %2035 = vmatprep.mubr.f32.mxu0 0.0
        %2036 = vmatmul.mubr.f32.gmra.mrb[0].mxu0 %v1867
        %v2037 = vpop.f32.mrb[0].mxu0
        %v2038 = vadd.f32 0.0, %v2037
        %v2039 = vpop.f32.mrb[0].mxu0
        %v2040 = vadd.f32 0.0, %v2039
        %2041 = vmatprep.mubr.f32.mxu0 0.0
        %2042 = vmatmul.mubr.f32.gmra.mrb[0].mxu0 %v1870
        %v2043 = vpop.f32.mrb[0].mxu0
        %v2044 = vadd.f32 0.0, %v2043
        %v2045 = vpop.f32.mrb[0].mxu0
        %v2046 = vadd.f32 0.0, %v2045
        %2047 = vmatprep.mubr.f32.mxu0 0.0
        %2048 = vmatmul.mubr.f32.gmra.mrb[0].mxu0 %v1873
        %v2049 = vpop.f32.mrb[0].mxu0
        %v2050 = vadd.f32 0.0, %v2049
        %v2051 = vpop.f32.mrb[0].mxu0
        %v2052 = vadd.f32 0.0, %v2051
        %2053 = vmatprep.mubr.f32.mxu0 0.0
        %2054 = vmatmul.mubr.f32.gmra.mrb[0].mxu0 %v1876
        %v2055 = vpop.f32.mrb[0].mxu0
        %v2056 = vadd.f32 0.0, %v2055
        %v2057 = vpop.f32.mrb[0].mxu0
        %v2058 = vadd.f32 0.0, %v2057
        %2059 = vmatprep.mubr.f32.mxu0 0.0
        %2060 = vmatmul.mubr.f32.gmra.mrb[0].mxu0 %v1879
        %v2061 = vpop.f32.mrb[0].mxu0
        %v2062 = vadd.f32 0.0, %v2061
        %v2063 = vpop.f32.mrb[0].mxu0
        %v2064 = vadd.f32 0.0, %v2063
        %2065 = vmatprep.mubr.f32.mxu0 0.0
        %2066 = vmatmul.mubr.f32.gmra.mrb[0].mxu0 %v1882
        %v2067 = vpop.f32.mrb[0].mxu0
        %v2068 = vadd.f32 0.0, %v2067
        %v2069 = vpop.f32.mrb[0].mxu0
        %v2070 = vadd.f32 0.0, %v2069
        %2071 = vmatprep.mubr.f32.mxu0 0.0
        %2072 = vmatmul.mubr.f32.gmra.mrb[0].mxu0 %v1885
        %v2073 = vpop.f32.mrb[0].mxu0
        %v2074 = vadd.f32 0.0, %v2073
        %v2075 = vpop.f32.mrb[0].mxu0
        %v2076 = vadd.f32 0.0, %v2075
        %2077 = vmatprep.mubr.f32.mxu0 0.0
        %2078 = vmatmul.mubr.f32.gmra.mrb[0].mxu0 %v1888
        %v2079 = vpop.f32.mrb[0].mxu0
        %v2080 = vadd.f32 0.0, %v2079
        %v2081 = vpop.f32.mrb[0].mxu0
        %v2082 = vadd.f32 0.0, %v2081
        %2083 = vmatprep.mubr.f32.mxu0 0.0
        %2084 = vmatmul.mubr.f32.gmra.mrb[0].mxu0 %v1891
        %v2085 = vpop.f32.mrb[0].mxu0
        %v2086 = vadd.f32 0.0, %v2085
        %v2087 = vpop.f32.mrb[0].mxu0
        %v2088 = vadd.f32 0.0, %v2087
        %2089 = vmatprep.mubr.f32.mxu0 0.0
        %2090 = vmatmul.mubr.f32.gmra.mrb[0].mxu0 %v1894
        %v2091 = vpop.f32.mrb[0].mxu0
        %v2092 = vadd.f32 0.0, %v2091
        %v2093 = vpop.f32.mrb[0].mxu0
        %v2094 = vadd.f32 0.0, %v2093
        %2095 = vmatprep.mubr.f32.mxu0 0.0
        %2096 = vmatmul.mubr.f32.gmra.mrb[0].mxu0 %v1897
        %v2097 = vpop.f32.mrb[0].mxu0
        %v2098 = vadd.f32 0.0, %v2097
        %v2099 = vpop.f32.mrb[0].mxu0
        %v2100 = vadd.f32 0.0, %v2099
        %2101 = vmatprep.mubr.f32.mxu0 0.0
        %2102 = vmatmul.mubr.f32.gmra.mrb[0].mxu0 %v1900
        %v2103 = vpop.f32.mrb[0].mxu0
        %v2104 = vadd.f32 0.0, %v2103
        %v2105 = vpop.f32.mrb[0].mxu0
        %v2106 = vadd.f32 0.0, %v2105
        %2107 = vmatprep.mubr.f32.mxu0 0.0
        %2108 = vmatmul.mubr.f32.gmra.mrb[0].mxu0 %v1903
        %v2109 = vpop.f32.mrb[0].mxu0
        %v2110 = vadd.f32 0.0, %v2109
        %v2111 = vpop.f32.mrb[0].mxu0
        %v2112 = vadd.f32 0.0, %v2111
        %2113 = vmatprep.mubr.f32.mxu0 0.0
        %2114 = vmatmul.mubr.f32.gmra.mrb[0].mxu0 %v1906
        %v2115 = vpop.f32.mrb[0].mxu0
        %v2116 = vadd.f32 0.0, %v2115
        %v2117 = vpop.f32.mrb[0].mxu0
        %v2118 = vadd.f32 0.0, %v2117
        %2119 = vmatprep.mubr.f32.mxu0 0.0
        %2120 = vmatmul.mubr.f32.gmra.mrb[0].mxu0 %v1909
        %v2121 = vpop.f32.mrb[0].mxu0
        %v2122 = vadd.f32 0.0, %v2121
        %v2123 = vpop.f32.mrb[0].mxu0
        %v2124 = vadd.f32 0.0, %v2123
        %2125 = vmatprep.mubr.f32.mxu0 0.0
        %2126 = vmatmul.mubr.f32.gmra.mrb[0].mxu0 %v1912
        %v2127 = vpop.f32.mrb[0].mxu0
        %v2128 = vadd.f32 0.0, %v2127
        %v2129 = vpop.f32.mrb[0].mxu0
        %v2130 = vadd.f32 0.0, %v2129
        %2131 = vmatprep.mubr.f32.mxu0 0.0
        %2132 = vmatmul.mubr.f32.gmra.mrb[0].mxu0 %v1915
        %v2133 = vpop.f32.mrb[0].mxu0
        %v2134 = vadd.f32 0.0, %v2133
        %v2135 = vpop.f32.mrb[0].mxu0
        %v2136 = vadd.f32 0.0, %v2135
        %2137 = vmatprep.mubr.f32.mxu0 0.0
        %2138 = vmatmul.mubr.f32.gmra.mrb[0].mxu0 %v1918
        %v2139 = vpop.f32.mrb[0].mxu0
        %v2140 = vadd.f32 0.0, %v2139
        %v2141 = vpop.f32.mrb[0].mxu0
        %v2142 = vadd.f32 0.0, %v2141
        %2143 = vmatprep.mubr.f32.mxu0 0.0
        %2144 = vmatmul.mubr.f32.gmra.mrb[0].mxu0 %v1921
        %v2145 = vpop.f32.mrb[0].mxu0
        %v2146 = vadd.f32 0.0, %v2145
        %v2147 = vpop.f32.mrb[0].mxu0
        %v2148 = vadd.f32 0.0, %v2147
        %2149 = vmatprep.mubr.f32.mxu0 0.0
        %2150 = vmatmul.mubr.f32.gmra.mrb[0].mxu0 %v1924
        %v2151 = vpop.f32.mrb[0].mxu0
        %v2152 = vadd.f32 0.0, %v2151
        %v2153 = vpop.f32.mrb[0].mxu0
        %v2154 = vadd.f32 0.0, %v2153
        %2155 = vmatprep.mubr.f32.mxu0 0.0
        %2156 = vmatmul.mubr.f32.gmra.mrb[0].mxu0 %v1927
        %v2157 = vpop.f32.mrb[0].mxu0
        %v2158 = vadd.f32 0.0, %v2157
        %v2159 = vpop.f32.mrb[0].mxu0
        %v2160 = vadd.f32 0.0, %v2159
        %2161 = vmatprep.mubr.f32.mxu0 0.0
        %2162 = vmatmul.mubr.f32.gmra.mrb[0].mxu0 %v1930
        %v2163 = vpop.f32.mrb[0].mxu0
        %v2164 = vadd.f32 0.0, %v2163
        %v2165 = vpop.f32.mrb[0].mxu0
        %v2166 = vadd.f32 0.0, %v2165
        %2167 = vmatprep.mubr.f32.mxu0 0.0
        %2168 = vmatmul.mubr.f32.gmra.mrb[0].mxu0 %v1933
        %v2169 = vpop.f32.mrb[0].mxu0
        %v2170 = vadd.f32 0.0, %v2169
        %v2171 = vpop.f32.mrb[0].mxu0
        %v2172 = vadd.f32 0.0, %v2171
        %2173 = vmatprep.mubr.f32.mxu0 0.0
        %2174 = vmatmul.mubr.f32.gmra.mrb[0].mxu0 %v1936
        %v2175 = vpop.f32.mrb[0].mxu0
        %v2176 = vadd.f32 0.0, %v2175
        %v2177 = vpop.f32.mrb[0].mxu0
        %v2178 = vadd.f32 0.0, %v2177
        %2179 = vmatprep.mubr.f32.mxu0 0.0
        %2180 = vmatmul.mubr.f32.gmra.mrb[0].mxu0 %v1939
        %v2181 = vpop.f32.mrb[0].mxu0
        %v2182 = vadd.f32 0.0, %v2181
        %v2183 = vpop.f32.mrb[0].mxu0
        %v2184 = vadd.f32 0.0, %v2183
        %2185 = vmatprep.mubr.f32.mxu0 0.0
        %2186 = vmatmul.mubr.f32.gmra.mrb[0].mxu0 %v1942
        %v2187 = vpop.f32.mrb[0].mxu0
        %v2188 = vadd.f32 0.0, %v2187
        %v2189 = vpop.f32.mrb[0].mxu0
        %v2190 = vadd.f32 0.0, %v2189
        %2191 = vmatprep.mubr.f32.mxu0 0.0
        %2192 = vmatmul.mubr.f32.gmra.mrb[0].mxu0 %v1945
        %v2193 = vpop.f32.mrb[0].mxu0
        %v2194 = vadd.f32 0.0, %v2193
        %v2195 = vpop.f32.mrb[0].mxu0
        %v2196 = vadd.f32 0.0, %v2195
        %2197 = vmatprep.mubr.f32.mxu0 0.0
        %2198 = vmatmul.mubr.f32.gmra.mrb[0].mxu0 %v1948
        %v2199 = vpop.f32.mrb[0].mxu0
        %v2200 = vadd.f32 0.0, %v2199
        %v2201 = vpop.f32.mrb[0].mxu0
        %v2202 = vadd.f32 0.0, %v2201
        %2203 = vmatprep.mubr.f32.mxu0 0.0
        %2204 = vmatmul.mubr.f32.gmra.mrb[0].mxu0 %v1951
        %v2205 = vpop.f32.mrb[0].mxu0
        %v2206 = vadd.f32 0.0, %v2205
        %v2207 = vpop.f32.mrb[0].mxu0
        %v2208 = vadd.f32 0.0, %v2207
        %2209 = vdwg.mxu0
        %v2210 = vmax.f32 %v2020, %v2022
        %2211 = vmax.xlane.f32.xlu0 %v2210
        %v2212 = vpop.xlane.xlu0 %2211
        %v2213 = vmax.f32 %v2026, %v2028
        %2214 = vmax.xlane.f32.xlu0 %v2213
        %v2215 = vpop.xlane.xlu0 %2214
        %v2216 = vmax.f32 %v2032, %v2034
        %2217 = vmax.xlane.f32.xlu0 %v2216
        %v2218 = vpop.xlane.xlu0 %2217
        %v2219 = vmax.f32 %v2038, %v2040
        %2220 = vmax.xlane.f32.xlu0 %v2219
        %v2221 = vpop.xlane.xlu0 %2220
        %v2222 = vmax.f32 %v2044, %v2046
        %2223 = vmax.xlane.f32.xlu0 %v2222
        %v2224 = vpop.xlane.xlu0 %2223
        %v2225 = vmax.f32 %v2050, %v2052
        %2226 = vmax.xlane.f32.xlu0 %v2225
        %v2227 = vpop.xlane.xlu0 %2226
        %v2228 = vmax.f32 %v2056, %v2058
        %2229 = vmax.xlane.f32.xlu0 %v2228
        %v2230 = vpop.xlane.xlu0 %2229
        %v2231 = vmax.f32 %v2062, %v2064
        %2232 = vmax.xlane.f32.xlu0 %v2231
        %v2233 = vpop.xlane.xlu0 %2232
        %v2234 = vmax.f32 %v2068, %v2070
        %2235 = vmax.xlane.f32.xlu0 %v2234
        %v2236 = vpop.xlane.xlu0 %2235
        %v2237 = vmax.f32 %v2074, %v2076
        %2238 = vmax.xlane.f32.xlu0 %v2237
        %v2239 = vpop.xlane.xlu0 %2238
        %v2240 = vmax.f32 %v2080, %v2082
        %2241 = vmax.xlane.f32.xlu0 %v2240
        %v2242 = vpop.xlane.xlu0 %2241
        %v2243 = vmax.f32 %v2086, %v2088
        %2244 = vmax.xlane.f32.xlu0 %v2243
        %v2245 = vpop.xlane.xlu0 %2244
        %v2246 = vmax.f32 %v2092, %v2094
        %2247 = vmax.xlane.f32.xlu0 %v2246
        %v2248 = vpop.xlane.xlu0 %2247
        %v2249 = vmax.f32 %v2098, %v2100
        %2250 = vmax.xlane.f32.xlu0 %v2249
        %v2251 = vpop.xlane.xlu0 %2250
        %v2252 = vmax.f32 %v2104, %v2106
        %2253 = vmax.xlane.f32.xlu0 %v2252
        %v2254 = vpop.xlane.xlu0 %2253
        %v2255 = vmax.f32 %v2110, %v2112
        %2256 = vmax.xlane.f32.xlu0 %v2255
        %v2257 = vpop.xlane.xlu0 %2256
        %v2258 = vmax.f32 %v2116, %v2118
        %2259 = vmax.xlane.f32.xlu0 %v2258
        %v2260 = vpop.xlane.xlu0 %2259
        %v2261 = vmax.f32 %v2122, %v2124
        %2262 = vmax.xlane.f32.xlu0 %v2261
        %v2263 = vpop.xlane.xlu0 %2262
        %v2264 = vmax.f32 %v2128, %v2130
        %2265 = vmax.xlane.f32.xlu0 %v2264
        %v2266 = vpop.xlane.xlu0 %2265
        %v2267 = vmax.f32 %v2134, %v2136
        %2268 = vmax.xlane.f32.xlu0 %v2267
        %v2269 = vpop.xlane.xlu0 %2268
        %v2270 = vmax.f32 %v2140, %v2142
        %2271 = vmax.xlane.f32.xlu0 %v2270
        %v2272 = vpop.xlane.xlu0 %2271
        %v2273 = vmax.f32 %v2146, %v2148
        %2274 = vmax.xlane.f32.xlu0 %v2273
        %v2275 = vpop.xlane.xlu0 %2274
        %v2276 = vmax.f32 %v2152, %v2154
        %2277 = vmax.xlane.f32.xlu0 %v2276
        %v2278 = vpop.xlane.xlu0 %2277
        %v2279 = vmax.f32 %v2158, %v2160
        %2280 = vmax.xlane.f32.xlu0 %v2279
        %v2281 = vpop.xlane.xlu0 %2280
        %v2282 = vmax.f32 %v2164, %v2166
        %2283 = vmax.xlane.f32.xlu0 %v2282
        %v2284 = vpop.xlane.xlu0 %2283
        %v2285 = vmax.f32 %v2170, %v2172
        %2286 = vmax.xlane.f32.xlu0 %v2285
        %v2287 = vpop.xlane.xlu0 %2286
        %v2288 = vmax.f32 %v2176, %v2178
        %2289 = vmax.xlane.f32.xlu0 %v2288
        %v2290 = vpop.xlane.xlu0 %2289
        %v2291 = vmax.f32 %v2182, %v2184
        %2292 = vmax.xlane.f32.xlu0 %v2291
        %v2293 = vpop.xlane.xlu0 %2292
        %v2294 = vmax.f32 %v2188, %v2190
        %2295 = vmax.xlane.f32.xlu0 %v2294
        %v2296 = vpop.xlane.xlu0 %2295
        %v2297 = vmax.f32 %v2194, %v2196
        %2298 = vmax.xlane.f32.xlu0 %v2297
        %v2299 = vpop.xlane.xlu0 %2298
        %v2300 = vmax.f32 %v2200, %v2202
        %2301 = vmax.xlane.f32.xlu0 %v2300
        %v2302 = vpop.xlane.xlu0 %2301
        %v2303 = vmax.f32 %v2206, %v2208
        %2304 = vmax.xlane.f32.xlu0 %v2303
        %v2305 = vpop.xlane.xlu0 %2304
        %v2306 = vsub.f32 %v2020, %v2212
        %v2307 = vsub.f32 %v2022, %v2212
        %v2308 = vsub.f32 %v2026, %v2215
        %v2309 = vsub.f32 %v2028, %v2215
        %v2310 = vsub.f32 %v2032, %v2218
        %v2311 = vsub.f32 %v2034, %v2218
        %v2312 = vsub.f32 %v2038, %v2221
        %v2313 = vsub.f32 %v2040, %v2221
        %v2314 = vsub.f32 %v2044, %v2224
        %v2315 = vsub.f32 %v2046, %v2224
        %v2316 = vsub.f32 %v2050, %v2227
        %v2317 = vsub.f32 %v2052, %v2227
        %v2318 = vsub.f32 %v2056, %v2230
        %v2319 = vsub.f32 %v2058, %v2230
        %v2320 = vsub.f32 %v2062, %v2233
        %v2321 = vsub.f32 %v2064, %v2233
        %v2322 = vsub.f32 %v2068, %v2236
        %v2323 = vsub.f32 %v2070, %v2236
        %v2324 = vsub.f32 %v2074, %v2239
        %v2325 = vsub.f32 %v2076, %v2239
        %v2326 = vsub.f32 %v2080, %v2242
        %v2327 = vsub.f32 %v2082, %v2242
        %v2328 = vsub.f32 %v2086, %v2245
        %v2329 = vsub.f32 %v2088, %v2245
        %v2330 = vsub.f32 %v2092, %v2248
        %v2331 = vsub.f32 %v2094, %v2248
        %v2332 = vsub.f32 %v2098, %v2251
        %v2333 = vsub.f32 %v2100, %v2251
        %v2334 = vsub.f32 %v2104, %v2254
        %v2335 = vsub.f32 %v2106, %v2254
        %v2336 = vsub.f32 %v2110, %v2257
        %v2337 = vsub.f32 %v2112, %v2257
        %v2338 = vsub.f32 %v2116, %v2260
        %v2339 = vsub.f32 %v2118, %v2260
        %v2340 = vsub.f32 %v2122, %v2263
        %v2341 = vsub.f32 %v2124, %v2263
        %v2342 = vsub.f32 %v2128, %v2266
        %v2343 = vsub.f32 %v2130, %v2266
        %v2344 = vsub.f32 %v2134, %v2269
        %v2345 = vsub.f32 %v2136, %v2269
        %v2346 = vsub.f32 %v2140, %v2272
        %v2347 = vsub.f32 %v2142, %v2272
        %v2348 = vsub.f32 %v2146, %v2275
        %v2349 = vsub.f32 %v2148, %v2275
        %v2350 = vsub.f32 %v2152, %v2278
        %v2351 = vsub.f32 %v2154, %v2278
        %v2352 = vsub.f32 %v2158, %v2281
        %v2353 = vsub.f32 %v2160, %v2281
        %v2354 = vsub.f32 %v2164, %v2284
        %v2355 = vsub.f32 %v2166, %v2284
        %v2356 = vsub.f32 %v2170, %v2287
        %v2357 = vsub.f32 %v2172, %v2287
        %v2358 = vsub.f32 %v2176, %v2290
        %v2359 = vsub.f32 %v2178, %v2290
        %v2360 = vsub.f32 %v2182, %v2293
        %v2361 = vsub.f32 %v2184, %v2293
        %v2362 = vsub.f32 %v2188, %v2296
        %v2363 = vsub.f32 %v2190, %v2296
        %v2364 = vsub.f32 %v2194, %v2299
        %v2365 = vsub.f32 %v2196, %v2299
        %v2366 = vsub.f32 %v2200, %v2302
        %v2367 = vsub.f32 %v2202, %v2302
        %v2368 = vsub.f32 %v2206, %v2305
        %v2369 = vsub.f32 %v2208, %v2305
        %v2370 = vmul.f32 %v2306, 1.442695
        %v2371 = vpow.pop %v2370
        %v2372 = vmul.f32 %v2307, 1.442695
        %v2373 = vpow.pop %v2372
        %v2374 = vmul.f32 %v2308, 1.442695
        %v2375 = vpow.pop %v2374
        %v2376 = vmul.f32 %v2309, 1.442695
        %v2377 = vpow.pop %v2376
        %v2378 = vmul.f32 %v2310, 1.442695
        %v2379 = vpow.pop %v2378
        %v2380 = vmul.f32 %v2311, 1.442695
        %v2381 = vpow.pop %v2380
        %v2382 = vmul.f32 %v2312, 1.442695
        %v2383 = vpow.pop %v2382
        %v2384 = vmul.f32 %v2313, 1.442695
        %v2385 = vpow.pop %v2384
        %v2386 = vmul.f32 %v2314, 1.442695
        %v2387 = vpow.pop %v2386
        %v2388 = vmul.f32 %v2315, 1.442695
        %v2389 = vpow.pop %v2388
        %v2390 = vmul.f32 %v2316, 1.442695
        %v2391 = vpow.pop %v2390
        %v2392 = vmul.f32 %v2317, 1.442695
        %v2393 = vpow.pop %v2392
        %v2394 = vmul.f32 %v2318, 1.442695
        %v2395 = vpow.pop %v2394
        %v2396 = vmul.f32 %v2319, 1.442695
        %v2397 = vpow.pop %v2396
        %v2398 = vmul.f32 %v2320, 1.442695
        %v2399 = vpow.pop %v2398
        %v2400 = vmul.f32 %v2321, 1.442695
        %v2401 = vpow.pop %v2400
        %v2402 = vmul.f32 %v2322, 1.442695
        %v2403 = vpow.pop %v2402
        %v2404 = vmul.f32 %v2323, 1.442695
        %v2405 = vpow.pop %v2404
        %v2406 = vmul.f32 %v2324, 1.442695
        %v2407 = vpow.pop %v2406
        %v2408 = vmul.f32 %v2325, 1.442695
        %v2409 = vpow.pop %v2408
        %v2410 = vmul.f32 %v2326, 1.442695
        %v2411 = vpow.pop %v2410
        %v2412 = vmul.f32 %v2327, 1.442695
        %v2413 = vpow.pop %v2412
        %v2414 = vmul.f32 %v2328, 1.442695
        %v2415 = vpow.pop %v2414
        %v2416 = vmul.f32 %v2329, 1.442695
        %v2417 = vpow.pop %v2416
        %v2418 = vmul.f32 %v2330, 1.442695
        %v2419 = vpow.pop %v2418
        %v2420 = vmul.f32 %v2331, 1.442695
        %v2421 = vpow.pop %v2420
        %v2422 = vmul.f32 %v2332, 1.442695
        %v2423 = vpow.pop %v2422
        %v2424 = vmul.f32 %v2333, 1.442695
        %v2425 = vpow.pop %v2424
        %v2426 = vmul.f32 %v2334, 1.442695
        %v2427 = vpow.pop %v2426
        %v2428 = vmul.f32 %v2335, 1.442695
        %v2429 = vpow.pop %v2428
        %v2430 = vmul.f32 %v2336, 1.442695
        %v2431 = vpow.pop %v2430
        %v2432 = vmul.f32 %v2337, 1.442695
        %v2433 = vpow.pop %v2432
        %v2434 = vmul.f32 %v2338, 1.442695
        %v2435 = vpow.pop %v2434
        %v2436 = vmul.f32 %v2339, 1.442695
        %v2437 = vpow.pop %v2436
        %v2438 = vmul.f32 %v2340, 1.442695
        %v2439 = vpow.pop %v2438
        %v2440 = vmul.f32 %v2341, 1.442695
        %v2441 = vpow.pop %v2440
        %v2442 = vmul.f32 %v2342, 1.442695
        %v2443 = vpow.pop %v2442
        %v2444 = vmul.f32 %v2343, 1.442695
        %v2445 = vpow.pop %v2444
        %v2446 = vmul.f32 %v2344, 1.442695
        %v2447 = vpow.pop %v2446
        %v2448 = vmul.f32 %v2345, 1.442695
        %v2449 = vpow.pop %v2448
        %v2450 = vmul.f32 %v2346, 1.442695
        %v2451 = vpow.pop %v2450
        %v2452 = vmul.f32 %v2347, 1.442695
        %v2453 = vpow.pop %v2452
        %v2454 = vmul.f32 %v2348, 1.442695
        %v2455 = vpow.pop %v2454
        %v2456 = vmul.f32 %v2349, 1.442695
        %v2457 = vpow.pop %v2456
        %v2458 = vmul.f32 %v2350, 1.442695
        %v2459 = vpow.pop %v2458
        %v2460 = vmul.f32 %v2351, 1.442695
        %v2461 = vpow.pop %v2460
        %v2462 = vmul.f32 %v2352, 1.442695
        %v2463 = vpow.pop %v2462
        %v2464 = vmul.f32 %v2353, 1.442695
        %v2465 = vpow.pop %v2464
        %v2466 = vmul.f32 %v2354, 1.442695
        %v2467 = vpow.pop %v2466
        %v2468 = vmul.f32 %v2355, 1.442695
        %v2469 = vpow.pop %v2468
        %v2470 = vmul.f32 %v2356, 1.442695
        %v2471 = vpow.pop %v2470
        %v2472 = vmul.f32 %v2357, 1.442695
        %v2473 = vpow.pop %v2472
        %v2474 = vmul.f32 %v2358, 1.442695
        %v2475 = vpow.pop %v2474
        %v2476 = vmul.f32 %v2359, 1.442695
        %v2477 = vpow.pop %v2476
        %v2478 = vmul.f32 %v2360, 1.442695
        %v2479 = vpow.pop %v2478
        %v2480 = vmul.f32 %v2361, 1.442695
        %v2481 = vpow.pop %v2480
        %v2482 = vmul.f32 %v2362, 1.442695
        %v2483 = vpow.pop %v2482
        %v2484 = vmul.f32 %v2363, 1.442695
        %v2485 = vpow.pop %v2484
        %v2486 = vmul.f32 %v2364, 1.442695
        %v2487 = vpow.pop %v2486
        %v2488 = vmul.f32 %v2365, 1.442695
        %v2489 = vpow.pop %v2488
        %v2490 = vmul.f32 %v2366, 1.442695
        %v2491 = vpow.pop %v2490
        %v2492 = vmul.f32 %v2367, 1.442695
        %v2493 = vpow.pop %v2492
        %v2494 = vmul.f32 %v2368, 1.442695
        %v2495 = vpow.pop %v2494
        %v2496 = vmul.f32 %v2369, 1.442695
        %v2497 = vpow.pop %v2496
        %v2498 = vadd.f32 %v2371, %v2373
        %2499 = vadd.xlane.f32.xlu0 %v2498
        %v2500 = vpop.xlane.xlu0 %2499
        %v2501 = vadd.f32 %v2375, %v2377
        %2502 = vadd.xlane.f32.xlu0 %v2501
        %v2503 = vpop.xlane.xlu0 %2502
        %v2504 = vadd.f32 %v2379, %v2381
        %2505 = vadd.xlane.f32.xlu0 %v2504
        %v2506 = vpop.xlane.xlu0 %2505
        %v2507 = vadd.f32 %v2383, %v2385
        %2508 = vadd.xlane.f32.xlu0 %v2507
        %v2509 = vpop.xlane.xlu0 %2508
        %v2510 = vadd.f32 %v2387, %v2389
        %2511 = vadd.xlane.f32.xlu0 %v2510
        %v2512 = vpop.xlane.xlu0 %2511
        %v2513 = vadd.f32 %v2391, %v2393
        %2514 = vadd.xlane.f32.xlu0 %v2513
        %v2515 = vpop.xlane.xlu0 %2514
        %v2516 = vadd.f32 %v2395, %v2397
        %2517 = vadd.xlane.f32.xlu0 %v2516
        %v2518 = vpop.xlane.xlu0 %2517
        %v2519 = vadd.f32 %v2399, %v2401
        %2520 = vadd.xlane.f32.xlu0 %v2519
        %v2521 = vpop.xlane.xlu0 %2520
        %v2522 = vadd.f32 %v2403, %v2405
        %2523 = vadd.xlane.f32.xlu0 %v2522
        %v2524 = vpop.xlane.xlu0 %2523
        %v2525 = vadd.f32 %v2407, %v2409
        %2526 = vadd.xlane.f32.xlu0 %v2525
        %v2527 = vpop.xlane.xlu0 %2526
        %v2528 = vadd.f32 %v2411, %v2413
        %2529 = vadd.xlane.f32.xlu0 %v2528
        %v2530 = vpop.xlane.xlu0 %2529
        %v2531 = vadd.f32 %v2415, %v2417
        %2532 = vadd.xlane.f32.xlu0 %v2531
        %v2533 = vpop.xlane.xlu0 %2532
        %v2534 = vadd.f32 %v2419, %v2421
        %2535 = vadd.xlane.f32.xlu0 %v2534
        %v2536 = vpop.xlane.xlu0 %2535
        %v2537 = vadd.f32 %v2423, %v2425
        %2538 = vadd.xlane.f32.xlu0 %v2537
        %v2539 = vpop.xlane.xlu0 %2538
        %v2540 = vadd.f32 %v2427, %v2429
        %2541 = vadd.xlane.f32.xlu0 %v2540
        %v2542 = vpop.xlane.xlu0 %2541
        %v2543 = vadd.f32 %v2431, %v2433
        %2544 = vadd.xlane.f32.xlu0 %v2543
        %v2545 = vpop.xlane.xlu0 %2544
        %v2546 = vadd.f32 %v2435, %v2437
        %2547 = vadd.xlane.f32.xlu0 %v2546
        %v2548 = vpop.xlane.xlu0 %2547
        %v2549 = vadd.f32 %v2439, %v2441
        %2550 = vadd.xlane.f32.xlu0 %v2549
        %v2551 = vpop.xlane.xlu0 %2550
        %v2552 = vadd.f32 %v2443, %v2445
        %2553 = vadd.xlane.f32.xlu0 %v2552
        %v2554 = vpop.xlane.xlu0 %2553
        %v2555 = vadd.f32 %v2447, %v2449
        %2556 = vadd.xlane.f32.xlu0 %v2555
        %v2557 = vpop.xlane.xlu0 %2556
        %v2558 = vadd.f32 %v2451, %v2453
        %2559 = vadd.xlane.f32.xlu0 %v2558
        %v2560 = vpop.xlane.xlu0 %2559
        %v2561 = vadd.f32 %v2455, %v2457
        %2562 = vadd.xlane.f32.xlu0 %v2561
        %v2563 = vpop.xlane.xlu0 %2562
        %v2564 = vadd.f32 %v2459, %v2461
        %2565 = vadd.xlane.f32.xlu0 %v2564
        %v2566 = vpop.xlane.xlu0 %2565
        %v2567 = vadd.f32 %v2463, %v2465
        %2568 = vadd.xlane.f32.xlu0 %v2567
        %v2569 = vpop.xlane.xlu0 %2568
        %v2570 = vadd.f32 %v2467, %v2469
        %2571 = vadd.xlane.f32.xlu0 %v2570
        %v2572 = vpop.xlane.xlu0 %2571
        %v2573 = vadd.f32 %v2471, %v2473
        %2574 = vadd.xlane.f32.xlu0 %v2573
        %v2575 = vpop.xlane.xlu0 %2574
        %v2576 = vadd.f32 %v2475, %v2477
        %2577 = vadd.xlane.f32.xlu0 %v2576
        %v2578 = vpop.xlane.xlu0 %2577
        %v2579 = vadd.f32 %v2479, %v2481
        %2580 = vadd.xlane.f32.xlu0 %v2579
        %v2581 = vpop.xlane.xlu0 %2580
        %v2582 = vadd.f32 %v2483, %v2485
        %2583 = vadd.xlane.f32.xlu0 %v2582
        %v2584 = vpop.xlane.xlu0 %2583
        %v2585 = vadd.f32 %v2487, %v2489
        %2586 = vadd.xlane.f32.xlu0 %v2585
        %v2587 = vpop.xlane.xlu0 %2586
        %v2588 = vadd.f32 %v2491, %v2493
        %2589 = vadd.xlane.f32.xlu0 %v2588
        %v2590 = vpop.xlane.xlu0 %2589
        %v2591 = vadd.f32 %v2495, %v2497
        %2592 = vadd.xlane.f32.xlu0 %v2591
        %v2593 = vpop.xlane.xlu0 %2592
        %v2594 = vrcp.pop %v2500
        %v2595 = vrcp.pop %v2503
        %v2596 = vrcp.pop %v2506
        %v2597 = vrcp.pop %v2509
        %v2598 = vrcp.pop %v2512
        %v2599 = vrcp.pop %v2515
        %v2600 = vrcp.pop %v2518
        %v2601 = vrcp.pop %v2521
        %v2602 = vrcp.pop %v2524
        %v2603 = vrcp.pop %v2527
        %v2604 = vrcp.pop %v2530
        %v2605 = vrcp.pop %v2533
        %v2606 = vrcp.pop %v2536
        %v2607 = vrcp.pop %v2539
        %v2608 = vrcp.pop %v2542
        %v2609 = vrcp.pop %v2545
        %v2610 = vrcp.pop %v2548
        %v2611 = vrcp.pop %v2551
        %v2612 = vrcp.pop %v2554
        %v2613 = vrcp.pop %v2557
        %v2614 = vrcp.pop %v2560
        %v2615 = vrcp.pop %v2563
        %v2616 = vrcp.pop %v2566
        %v2617 = vrcp.pop %v2569
        %v2618 = vrcp.pop %v2572
        %v2619 = vrcp.pop %v2575
        %v2620 = vrcp.pop %v2578
        %v2621 = vrcp.pop %v2581
        %v2622 = vrcp.pop %v2584
        %v2623 = vrcp.pop %v2587
        %v2624 = vrcp.pop %v2590
        %v2625 = vrcp.pop %v2593
        %v2626 = vmul.f32 %v2371, %v2594
        %v2627 = vmul.f32 %v2373, %v2594
        %v2628 = vmul.f32 %v2375, %v2595
        %v2629 = vmul.f32 %v2377, %v2595
        %v2630 = vmul.f32 %v2379, %v2596
        %v2631 = vmul.f32 %v2381, %v2596
        %v2632 = vmul.f32 %v2383, %v2597
        %v2633 = vmul.f32 %v2385, %v2597
        %v2634 = vmul.f32 %v2387, %v2598
        %v2635 = vmul.f32 %v2389, %v2598
        %v2636 = vmul.f32 %v2391, %v2599
        %v2637 = vmul.f32 %v2393, %v2599
        %v2638 = vmul.f32 %v2395, %v2600
        %v2639 = vmul.f32 %v2397, %v2600
        %v2640 = vmul.f32 %v2399, %v2601
        %v2641 = vmul.f32 %v2401, %v2601
        %v2642 = vmul.f32 %v2403, %v2602
        %v2643 = vmul.f32 %v2405, %v2602
        %v2644 = vmul.f32 %v2407, %v2603
        %v2645 = vmul.f32 %v2409, %v2603
        %v2646 = vmul.f32 %v2411, %v2604
        %v2647 = vmul.f32 %v2413, %v2604
        %v2648 = vmul.f32 %v2415, %v2605
        %v2649 = vmul.f32 %v2417, %v2605
        %v2650 = vmul.f32 %v2419, %v2606
        %v2651 = vmul.f32 %v2421, %v2606
        %v2652 = vmul.f32 %v2423, %v2607
        %v2653 = vmul.f32 %v2425, %v2607
        %v2654 = vmul.f32 %v2427, %v2608
        %v2655 = vmul.f32 %v2429, %v2608
        %v2656 = vmul.f32 %v2431, %v2609
        %v2657 = vmul.f32 %v2433, %v2609
        %v2658 = vmul.f32 %v2435, %v2610
        %v2659 = vmul.f32 %v2437, %v2610
        %v2660 = vmul.f32 %v2439, %v2611
        %v2661 = vmul.f32 %v2441, %v2611
        %v2662 = vmul.f32 %v2443, %v2612
        %v2663 = vmul.f32 %v2445, %v2612
        %v2664 = vmul.f32 %v2447, %v2613
        %v2665 = vmul.f32 %v2449, %v2613
        %v2666 = vmul.f32 %v2451, %v2614
        %v2667 = vmul.f32 %v2453, %v2614
        %v2668 = vmul.f32 %v2455, %v2615
        %v2669 = vmul.f32 %v2457, %v2615
        %v2670 = vmul.f32 %v2459, %v2616
        %v2671 = vmul.f32 %v2461, %v2616
        %v2672 = vmul.f32 %v2463, %v2617
        %v2673 = vmul.f32 %v2465, %v2617
        %v2674 = vmul.f32 %v2467, %v2618
        %v2675 = vmul.f32 %v2469, %v2618
        %v2676 = vmul.f32 %v2471, %v2619
        %v2677 = vmul.f32 %v2473, %v2619
        %v2678 = vmul.f32 %v2475, %v2620
        %v2679 = vmul.f32 %v2477, %v2620
        %v2680 = vmul.f32 %v2479, %v2621
        %v2681 = vmul.f32 %v2481, %v2621
        %v2682 = vmul.f32 %v2483, %v2622
        %v2683 = vmul.f32 %v2485, %v2622
        %v2684 = vmul.f32 %v2487, %v2623
        %v2685 = vmul.f32 %v2489, %v2623
        %v2686 = vmul.f32 %v2491, %v2624
        %v2687 = vmul.f32 %v2493, %v2624
        %v2688 = vmul.f32 %v2495, %v2625
        %v2689 = vmul.f32 %v2497, %v2625
        %2690 = vmatprep.subr.mxu0 %v2627
        %2691 = vmatpush1.xpose.msra.mxu0 %v2626
        %2692 = vmatprep.subr.mxu0 %v2629
        %2693 = vmatpush1.xpose.msra.mxu0 %v2628
        %2694 = vmatprep.subr.mxu0 %v2631
        %2695 = vmatpush1.xpose.msra.mxu0 %v2630
        %2696 = vmatprep.subr.mxu0 %v2633
        %2697 = vmatpush1.xpose.msra.mxu0 %v2632
        %2698 = vmatprep.subr.mxu0 %v2635
        %2699 = vmatpush1.xpose.msra.mxu0 %v2634
        %2700 = vmatprep.subr.mxu0 %v2637
        %2701 = vmatpush1.xpose.msra.mxu0 %v2636
        %2702 = vmatprep.subr.mxu0 %v2639
        %2703 = vmatpush1.xpose.msra.mxu0 %v2638
        %2704 = vmatprep.subr.mxu0 %v2641
        %2705 = vmatpush1.xpose.msra.mxu0 %v2640
        %2706 = vmatprep.subr.mxu0 %v2643
        %2707 = vmatpush1.xpose.msra.mxu0 %v2642
        %2708 = vmatprep.subr.mxu0 %v2645
        %2709 = vmatpush1.xpose.msra.mxu0 %v2644
        %2710 = vmatprep.subr.mxu0 %v2647
        %2711 = vmatpush1.xpose.msra.mxu0 %v2646
        %2712 = vmatprep.subr.mxu0 %v2649
        %2713 = vmatpush1.xpose.msra.mxu0 %v2648
        %2714 = vmatprep.subr.mxu0 %v2651
        %2715 = vmatpush1.xpose.msra.mxu0 %v2650
        %2716 = vmatprep.subr.mxu0 %v2653
        %2717 = vmatpush1.xpose.msra.mxu0 %v2652
        %2718 = vmatprep.subr.mxu0 %v2655
        %2719 = vmatpush1.xpose.msra.mxu0 %v2654
        %2720 = vmatprep.subr.mxu0 %v2657
        %2721 = vmatpush1.xpose.msra.mxu0 %v2656
        %2722 = vmatprep.subr.mxu0 %v2659
        %2723 = vmatpush1.xpose.msra.mxu0 %v2658
        %2724 = vmatprep.subr.mxu0 %v2661
        %2725 = vmatpush1.xpose.msra.mxu0 %v2660
        %2726 = vmatprep.subr.mxu0 %v2663
        %2727 = vmatpush1.xpose.msra.mxu0 %v2662
        %2728 = vmatprep.subr.mxu0 %v2665
        %2729 = vmatpush1.xpose.msra.mxu0 %v2664
        %2730 = vmatprep.subr.mxu0 %v2667
        %2731 = vmatpush1.xpose.msra.mxu0 %v2666
        %2732 = vmatprep.subr.mxu0 %v2669
        %2733 = vmatpush1.xpose.msra.mxu0 %v2668
        %2734 = vmatprep.subr.mxu0 %v2671
        %2735 = vmatpush1.xpose.msra.mxu0 %v2670
        %2736 = vmatprep.subr.mxu0 %v2673
        %2737 = vmatpush1.xpose.msra.mxu0 %v2672
        %2738 = vmatprep.subr.mxu0 %v2675
        %2739 = vmatpush1.xpose.msra.mxu0 %v2674
        %2740 = vmatprep.subr.mxu0 %v2677
        %2741 = vmatpush1.xpose.msra.mxu0 %v2676
        %2742 = vmatprep.subr.mxu0 %v2679
        %2743 = vmatpush1.xpose.msra.mxu0 %v2678
        %2744 = vmatprep.subr.mxu0 %v2681
        %2745 = vmatpush1.xpose.msra.mxu0 %v2680
        %2746 = vmatprep.subr.mxu0 %v2683
        %2747 = vmatpush1.xpose.msra.mxu0 %v2682
        %2748 = vmatprep.subr.mxu0 %v2685
        %2749 = vmatpush1.xpose.msra.mxu0 %v2684
        %2750 = vmatprep.subr.mxu0 %v2687
        %2751 = vmatpush1.xpose.msra.mxu0 %v2686
        %2752 = vmatprep.subr.mxu0 %v2689
        %2753 = vmatpush1.xpose.msra.mxu0 %v2688
        %2754 = vmatprep.mubr.f32.mxu0 %v798
        %2755 = vmatmul.mubr.f32.gmra.mrb[0].mxu0 %v796
        %v2756 = vpop.f32.mrb[0].mxu0
        %v2757 = vadd.f32 0.0, %v2756
        %v2758 = vpop.f32.mrb[0].mxu0
        %v2759 = vadd.f32 0.0, %v2758
        %2760 = vmatprep.mubr.f32.mxu0 %v804
        %2761 = vmatmul.mubr.f32.gmra.mrb[0].mxu0 %v802
        %v2762 = vpop.f32.mrb[0].mxu0
        %v2763 = vadd.f32 0.0, %v2762
        %v2764 = vpop.f32.mrb[0].mxu0
        %v2765 = vadd.f32 0.0, %v2764
        %2766 = vdwg.mxu0
        %2767 = vxpose.xlu0.b32.start [1/16] %v808, 128
        %2768 = vxpose.xlu0.b32.cont [2/16] %v809, 128
        %2769 = vxpose.xlu0.b32.cont [3/16] 0.0, 128
        %2770 = vxpose.xlu0.b32.cont [4/16] 0.0, 128
        %2771 = vxpose.xlu0.b32.cont [5/16] 0.0, 128
        %2772 = vxpose.xlu0.b32.cont [6/16] 0.0, 128
        %2773 = vxpose.xlu0.b32.cont [7/16] 0.0, 128
        %2774 = vxpose.xlu0.b32.cont [8/16] 0.0, 128
        %2775 = vxpose.xlu0.b32.cont [9/16] 0.0, 128
        %2776 = vxpose.xlu0.b32.cont [10/16] 0.0, 128
        %2777 = vxpose.xlu0.b32.cont [11/16] 0.0, 128
        %2778 = vxpose.xlu0.b32.cont [12/16] 0.0, 128
        %2779 = vxpose.xlu0.b32.cont [13/16] 0.0, 128
        %2780 = vxpose.xlu0.b32.cont [14/16] 0.0, 128
        %2781 = vxpose.xlu0.b32.cont [15/16] 0.0, 128
        %2782 = vxpose.xlu0.b32.end [16/16] 0.0, 128
        %v2783 = vpop.trf.xlu0
        %v2784 = vpop.trf.xlu0
        %v2785 = vpop.trf.xlu0
        %v2786 = vpop.trf.xlu0
        %v2787 = vpop.trf.xlu0
        %v2788 = vpop.trf.xlu0
        %v2789 = vpop.trf.xlu0
        %v2790 = vpop.trf.xlu0
        %v2791 = vpop.trf.xlu0
        %v2792 = vpop.trf.xlu0
        %v2793 = vpop.trf.xlu0
        %v2794 = vpop.trf.xlu0
        %v2795 = vpop.trf.xlu0
        %v2796 = vpop.trf.xlu0
        %v2797 = vpop.trf.xlu0
        %v2798 = vpop.trf.xlu0
        %v2800 = vsel %vm878, %v2783, 0
        %v2803 = vsel %vm878, %v2784, 0
        %v2806 = vsel %vm878, %v2785, 0
        %v2809 = vsel %vm878, %v2786, 0
        %2811 = vmatprep.subr.mxu0 %v2759
        %2812 = vmatpush1.msra.mxu0 %v2757
        %2813 = vmatprep.subr.mxu0 %v2765
        %2814 = vmatpush1.msra.mxu0 %v2763
        %2815 = vmatprep.subr.mxu0 0.0
        %2816 = vmatpush1.msra.mxu0 0.0
        %2817 = vmatprep.subr.mxu0 0.0
        %2818 = vmatpush1.msra.mxu0 0.0
        %2819 = vmatprep.subr.mxu0 0.0
        %2820 = vmatpush1.msra.mxu0 0.0
        %2821 = vmatprep.subr.mxu0 0.0
        %2822 = vmatpush1.msra.mxu0 0.0
        %2823 = vmatprep.subr.mxu0 0.0
        %2824 = vmatpush1.msra.mxu0 0.0
        %2825 = vmatprep.subr.mxu0 0.0
        %2826 = vmatpush1.msra.mxu0 0.0
        %2827 = vmatprep.subr.mxu0 0.0
        %2828 = vmatpush1.msra.mxu0 0.0
        %2829 = vmatprep.subr.mxu0 0.0
        %2830 = vmatpush1.msra.mxu0 0.0
        %2831 = vmatprep.subr.mxu0 0.0
        %2832 = vmatpush1.msra.mxu0 0.0
        %2833 = vmatprep.subr.mxu0 0.0
        %2834 = vmatpush1.msra.mxu0 0.0
        %2835 = vmatprep.subr.mxu0 0.0
        %2836 = vmatpush1.msra.mxu0 0.0
        %2837 = vmatprep.subr.mxu0 0.0
        %2838 = vmatpush1.msra.mxu0 0.0
        %2839 = vmatprep.subr.mxu0 0.0
        %2840 = vmatpush1.msra.mxu0 0.0
        %2841 = vmatprep.subr.mxu0 0.0
        %2842 = vmatpush1.msra.mxu0 0.0
        %2843 = vmatprep.subr.mxu0 0.0
        %2844 = vmatpush1.msra.mxu0 0.0
        %2845 = vmatprep.subr.mxu0 0.0
        %2846 = vmatpush1.msra.mxu0 0.0
        %2847 = vmatprep.subr.mxu0 0.0
        %2848 = vmatpush1.msra.mxu0 0.0
        %2849 = vmatprep.subr.mxu0 0.0
        %2850 = vmatpush1.msra.mxu0 0.0
        %2851 = vmatprep.subr.mxu0 0.0
        %2852 = vmatpush1.msra.mxu0 0.0
        %2853 = vmatprep.subr.mxu0 0.0
        %2854 = vmatpush1.msra.mxu0 0.0
        %2855 = vmatprep.subr.mxu0 0.0
        %2856 = vmatpush1.msra.mxu0 0.0
        %2857 = vmatprep.subr.mxu0 0.0
        %2858 = vmatpush1.msra.mxu0 0.0
        %2859 = vmatprep.subr.mxu0 0.0
        %2860 = vmatpush1.msra.mxu0 0.0
        %2861 = vmatprep.subr.mxu0 0.0
        %2862 = vmatpush1.msra.mxu0 0.0
        %2863 = vmatprep.subr.mxu0 0.0
        %2864 = vmatpush1.msra.mxu0 0.0
        %2865 = vmatprep.subr.mxu0 0.0
        %2866 = vmatpush1.msra.mxu0 0.0
        %2867 = vmatprep.subr.mxu0 0.0
        %2868 = vmatpush1.msra.mxu0 0.0
        %2869 = vmatprep.subr.mxu0 0.0
        %2870 = vmatpush1.msra.mxu0 0.0
        %2871 = vmatprep.subr.mxu0 0.0
        %2872 = vmatpush1.msra.mxu0 0.0
        %2873 = vmatprep.subr.mxu0 0.0
        %2874 = vmatpush1.msra.mxu0 0.0
        %2875 = vmatprep.mubr.f32.mxu0 0.0
        %2876 = vmatmul.mubr.f32.gmra.mrb[0].mxu0 %v2800
        %v2877 = vpop.f32.mrb[0].mxu0
        %v2878 = vadd.f32 0.0, %v2877
        %v2879 = vpop.f32.mrb[0].mxu0
        %v2880 = vadd.f32 0.0, %v2879
        %2881 = vmatprep.mubr.f32.mxu0 0.0
        %2882 = vmatmul.mubr.f32.gmra.mrb[0].mxu0 %v2803
        %v2883 = vpop.f32.mrb[0].mxu0
        %v2884 = vadd.f32 0.0, %v2883
        %v2885 = vpop.f32.mrb[0].mxu0
        %v2886 = vadd.f32 0.0, %v2885
        %2887 = vmatprep.mubr.f32.mxu0 0.0
        %2888 = vmatmul.mubr.f32.gmra.mrb[0].mxu0 %v2806
        %v2889 = vpop.f32.mrb[0].mxu0
        %v2890 = vadd.f32 0.0, %v2889
        %v2891 = vpop.f32.mrb[0].mxu0
        %v2892 = vadd.f32 0.0, %v2891
        %2893 = vmatprep.mubr.f32.mxu0 0.0
        %2894 = vmatmul.mubr.f32.gmra.mrb[0].mxu0 %v2809
        %v2895 = vpop.f32.mrb[0].mxu0
        %v2896 = vadd.f32 0.0, %v2895
        %v2897 = vpop.f32.mrb[0].mxu0
        %v2898 = vadd.f32 0.0, %v2897
        %2899 = vdwg.mxu0
        %2900 = vxpose.xlu0.b32.start [1/16] %v806, 128
        %2901 = vxpose.xlu0.b32.cont [2/16] %v807, 128
        %2902 = vxpose.xlu0.b32.cont [3/16] 0.0, 128
        %2903 = vxpose.xlu0.b32.cont [4/16] 0.0, 128
        %2904 = vxpose.xlu0.b32.cont [5/16] 0.0, 128
        %2905 = vxpose.xlu0.b32.cont [6/16] 0.0, 128
        %2906 = vxpose.xlu0.b32.cont [7/16] 0.0, 128
        %2907 = vxpose.xlu0.b32.cont [8/16] 0.0, 128
        %2908 = vxpose.xlu0.b32.cont [9/16] 0.0, 128
        %2909 = vxpose.xlu0.b32.cont [10/16] 0.0, 128
        %2910 = vxpose.xlu0.b32.cont [11/16] 0.0, 128
        %2911 = vxpose.xlu0.b32.cont [12/16] 0.0, 128
        %2912 = vxpose.xlu0.b32.cont [13/16] 0.0, 128
        %2913 = vxpose.xlu0.b32.cont [14/16] 0.0, 128
        %2914 = vxpose.xlu0.b32.cont [15/16] 0.0, 128
        %2915 = vxpose.xlu0.b32.end [16/16] 0.0, 128
        %v2916 = vpop.trf.xlu0
        %v2917 = vpop.trf.xlu0
        %v2918 = vpop.trf.xlu0
        %v2919 = vpop.trf.xlu0
        %v2920 = vpop.trf.xlu0
        %v2921 = vpop.trf.xlu0
        %v2922 = vpop.trf.xlu0
        %v2923 = vpop.trf.xlu0
        %v2924 = vpop.trf.xlu0
        %v2925 = vpop.trf.xlu0
        %v2926 = vpop.trf.xlu0
        %v2927 = vpop.trf.xlu0
        %v2928 = vpop.trf.xlu0
        %v2929 = vpop.trf.xlu0
        %v2930 = vpop.trf.xlu0
        %v2931 = vpop.trf.xlu0
        %v2933 = vsel %vm878, %v2916, 0
        %v2936 = vsel %vm878, %v2917, 0
        %v2939 = vsel %vm878, %v2918, 0
        %v2942 = vsel %vm878, %v2919, 0
        %2944 = vmatprep.subr.mxu0 %v1781
        %2945 = vmatpush1.msra.mxu0 %v1779
        %2946 = vmatprep.subr.mxu0 %v1787
        %2947 = vmatpush1.msra.mxu0 %v1785
        %2948 = vmatprep.subr.mxu0 0.0
        %2949 = vmatpush1.msra.mxu0 0.0
        %2950 = vmatprep.subr.mxu0 0.0
        %2951 = vmatpush1.msra.mxu0 0.0
        %2952 = vmatprep.subr.mxu0 0.0
        %2953 = vmatpush1.msra.mxu0 0.0
        %2954 = vmatprep.subr.mxu0 0.0
        %2955 = vmatpush1.msra.mxu0 0.0
        %2956 = vmatprep.subr.mxu0 0.0
        %2957 = vmatpush1.msra.mxu0 0.0
        %2958 = vmatprep.subr.mxu0 0.0
        %2959 = vmatpush1.msra.mxu0 0.0
        %2960 = vmatprep.subr.mxu0 0.0
        %2961 = vmatpush1.msra.mxu0 0.0
        %2962 = vmatprep.subr.mxu0 0.0
        %2963 = vmatpush1.msra.mxu0 0.0
        %2964 = vmatprep.subr.mxu0 0.0
        %2965 = vmatpush1.msra.mxu0 0.0
        %2966 = vmatprep.subr.mxu0 0.0
        %2967 = vmatpush1.msra.mxu0 0.0
        %2968 = vmatprep.subr.mxu0 0.0
        %2969 = vmatpush1.msra.mxu0 0.0
        %2970 = vmatprep.subr.mxu0 0.0
        %2971 = vmatpush1.msra.mxu0 0.0
        %2972 = vmatprep.subr.mxu0 0.0
        %2973 = vmatpush1.msra.mxu0 0.0
        %2974 = vmatprep.subr.mxu0 0.0
        %2975 = vmatpush1.msra.mxu0 0.0
        %2976 = vmatprep.subr.mxu0 0.0
        %2977 = vmatpush1.msra.mxu0 0.0
        %2978 = vmatprep.subr.mxu0 0.0
        %2979 = vmatpush1.msra.mxu0 0.0
        %2980 = vmatprep.subr.mxu0 0.0
        %2981 = vmatpush1.msra.mxu0 0.0
        %2982 = vmatprep.subr.mxu0 0.0
        %2983 = vmatpush1.msra.mxu0 0.0
        %2984 = vmatprep.subr.mxu0 0.0
        %2985 = vmatpush1.msra.mxu0 0.0
        %2986 = vmatprep.subr.mxu0 0.0
        %2987 = vmatpush1.msra.mxu0 0.0
        %2988 = vmatprep.subr.mxu0 0.0
        %2989 = vmatpush1.msra.mxu0 0.0
        %2990 = vmatprep.subr.mxu0 0.0
        %2991 = vmatpush1.msra.mxu0 0.0
        %2992 = vmatprep.subr.mxu0 0.0
        %2993 = vmatpush1.msra.mxu0 0.0
        %2994 = vmatprep.subr.mxu0 0.0
        %2995 = vmatpush1.msra.mxu0 0.0
        %2996 = vmatprep.subr.mxu0 0.0
        %2997 = vmatpush1.msra.mxu0 0.0
        %2998 = vmatprep.subr.mxu0 0.0
        %2999 = vmatpush1.msra.mxu0 0.0
        %3000 = vmatprep.subr.mxu0 0.0
        %3001 = vmatpush1.msra.mxu0 0.0
        %3002 = vmatprep.subr.mxu0 0.0
        %3003 = vmatpush1.msra.mxu0 0.0
        %3004 = vmatprep.subr.mxu0 0.0
        %3005 = vmatpush1.msra.mxu0 0.0
        %3006 = vmatprep.subr.mxu0 0.0
        %3007 = vmatpush1.msra.mxu0 0.0
        %3008 = vmatprep.mubr.f32.mxu0 0.0
        %3009 = vmatmul.mubr.f32.gmra.mrb[0].mxu0 %v2933
        %v3010 = vpop.f32.mrb[0].mxu0
        %v3011 = vadd.f32 %v2878, %v3010
        %v3012 = vpop.f32.mrb[0].mxu0
        %v3013 = vadd.f32 %v2880, %v3012
        %3014 = vmatprep.mubr.f32.mxu0 0.0
        %3015 = vmatmul.mubr.f32.gmra.mrb[0].mxu0 %v2936
        %v3016 = vpop.f32.mrb[0].mxu0
        %v3017 = vadd.f32 %v2884, %v3016
        %v3018 = vpop.f32.mrb[0].mxu0
        %v3019 = vadd.f32 %v2886, %v3018
        %3020 = vmatprep.mubr.f32.mxu0 0.0
        %3021 = vmatmul.mubr.f32.gmra.mrb[0].mxu0 %v2939
        %v3022 = vpop.f32.mrb[0].mxu0
        %v3023 = vadd.f32 %v2890, %v3022
        %v3024 = vpop.f32.mrb[0].mxu0
        %v3025 = vadd.f32 %v2892, %v3024
        %3026 = vmatprep.mubr.f32.mxu0 0.0
        %3027 = vmatmul.mubr.f32.gmra.mrb[0].mxu0 %v2942
        %v3028 = vpop.f32.mrb[0].mxu0
        %v3029 = vadd.f32 %v2896, %v3028
        %v3030 = vpop.f32.mrb[0].mxu0
        %v3031 = vadd.f32 %v2898, %v3030
        %3032 = vdwg.mxu0
        %v3033 = vld [vmem:[%s5] sm:$0xff]
        %v3034 = vld [vmem:[%s5 + $0x8] sm:$0xff]
        %v3035 = vld [vmem:[%s5 + $0x10] sm:$0xff]
        %v3036 = vld [vmem:[%s5 + $0x18] sm:$0xff]
        %3038 = vset.pattern.permute.xlu0 0
        %3039 = vperm.xlu0 %3038, %v3033
        %v3040 = vpop.permute.xlu0 %3039
        %3043 = vset.pattern.permute.xlu0 0
        %3044 = vperm.xlu0 %3043, %v3034
        %v3045 = vpop.permute.xlu0 %3044
        %3048 = vset.pattern.permute.xlu0 0
        %3049 = vperm.xlu0 %3048, %v3035
        %v3050 = vpop.permute.xlu0 %3049
        %3053 = vset.pattern.permute.xlu0 0
        %3054 = vperm.xlu0 %3053, %v3036
        %v3055 = vpop.permute.xlu0 %3054
        %v3057 = vadd.f32 %v3011, %v3040
        %v3058 = vadd.f32 %v3013, %v3040
        %v3059 = vadd.f32 %v3017, %v3045
        %v3060 = vadd.f32 %v3019, %v3045
        %v3061 = vadd.f32 %v3023, %v3050
        %v3062 = vadd.f32 %v3025, %v3050
        %v3063 = vadd.f32 %v3029, %v3055
        %v3064 = vadd.f32 %v3031, %v3055
        %v3065 = vadd.f32 %v3057, %v250
        %v3066 = vadd.f32 %v3058, %v251
        %v3067 = vadd.f32 %v3059, %v252
        %v3068 = vadd.f32 %v3060, %v253
        %v3069 = vadd.f32 %v3061, %v254
        %v3070 = vadd.f32 %v3062, %v255
        %v3071 = vadd.f32 %v3063, %v256
        %v3072 = vadd.f32 %v3064, %v257
        %3073 = vst [vmem:[%s244] sm:$0xff] %v3065
        %3074 = vst [vmem:[%s244 + $0x8] sm:$0xff] %v3066
        %3075 = vst [vmem:[%s244 + $0x10] sm:$0xff] %v3067
        %3076 = vst [vmem:[%s244 + $0x18] sm:$0xff] %v3068
        %3077 = vst [vmem:[%s244 + $0x20] sm:$0xff] %v3069
        %3078 = vst [vmem:[%s244 + $0x28] sm:$0xff] %v3070
        %3079 = vst [vmem:[%s244 + $0x30] sm:$0xff] %v3071
        %3080 = vst [vmem:[%s244 + $0x38] sm:$0xff] %v3072
        %s3081 = sand.u32 %s159, 1
        %s3082 = scalar_lea.sflag [#allocation3], %s3081
        %s3083 = sand.u32 %s159, 1
        %s3084 = smul.addr %s3083, 64
        %s3085 = scalar_lea.vmem [#allocation2], %s3084
        // Predicated region
        $region45: #{tpu_custom_call.1} parent=43 // pred_check
          %p3086 = pneg %p169
        $region46: #{tpu_custom_call.1} parent=43 // pred_check_branch
          %3088 = sbr.rel (%p3086) target = $region48
        $region47: #{tpu_custom_call.1} parent=43 // pred_region
          %s3090 = ssub.s32 1024, 1024
          %3091 = vsyncadd %s3082, %s3090
          %s3092 = smul.addr %s20, 8
          %s3093 = smul.addr %s3092, 128
          %s3094 = scalar_lea.hbm %s6, %s3093
          %s3095 = sshll.u32 %s3085, 4
          %s3096 = int_to_ptr.vmem [resolvable:$true] %s3095
          %3101 = dma.vmem_to_hbm [thread:$0]  %s3096, 1024, %s3094, %s3082, 256, 256, 16
        $region48: #{tpu_custom_call.1} parent=43 // pred_fallthru
          _
      $region44: #{tpu_custom_call.1} parent=5 // pred_fallthru
        _
      %p3102 = scmp.le.s32.totalorder 2, %s15
      // Predicated region
      $region49: #{tpu_custom_call.1} parent=5 // pred_check
        %p3103 = pneg %p3102
      $region50: #{tpu_custom_call.1} parent=5 // pred_check_branch
        %3105 = sbr.rel (%p3103) target = $region52
      $region51: #{tpu_custom_call.1} parent=5 // pred_region
        %s3106 = ssub.s32 %s15, 2
        // Predicated region
        $region53: #{tpu_custom_call.1} parent=51 // pred_check
          %p3107 = pneg %p175
        $region54: #{tpu_custom_call.1} parent=51 // pred_check_branch
          %3109 = sbr.rel (%p3107) target = $region56
        $region55: #{tpu_custom_call.1} parent=51 // pred_region
          %s3110 = sand.u32 %s160, 1
          %s3111 = scalar_lea.sflag [#allocation3], %s3110
          %s3112 = sand.u32 %s160, 1
          %s3113 = smul.addr %s3112, 64
          %s3114 = scalar_lea.vmem [#allocation2], %s3113
          %3115 = dma.done %s3111, 1024
        $region56: #{tpu_custom_call.1} parent=51 // pred_fallthru
          _
      $region52: #{tpu_custom_call.1} parent=5 // pred_fallthru
        _
    $region6: #{tpu_custom_call.1} parent=1 // loop_footer
      %s19 = sadd.s32 1, %s15
    $region7: #{tpu_custom_call.1} parent=1 // loop_footer_branch
      %14 = sbr.rel target = $region3
    $region8: #{tpu_custom_call.1} parent=1 // loop_exit
      _
    %3116 = vsyncpa [#allocation3], 1
    %s3117 = scalar_lea.sflag [#allocation3], 1
    %3118 = vsyncpa %s3117, 1

</llo_original>
